<compile_context>
chip_gen: v7x
topology: tpu7x:2x2x1
jax: 0.10.0
libtpu: 0.0.40
codegen_flags: <defaults>
</compile_context>

<pallas_src>
import jax
import jax.numpy as jnp
from jax import lax
from jax.experimental import pallas as pl
from jax.experimental.pallas import tpu as pltpu

MAX_ROW_TILE = 256                    # MXU-friendly on v5e (128-mult) and v6e/v7x (256)
VMEM_LIMIT_BYTES = 32 * 1024 * 1024   # fits scoped VMEM on v5e/v6e/v7x with headroom


# ------------------------------ helpers --------------------------------------
def _round_up(x, m):
    return (x + m - 1) // m * m


def _pad_and_tile(dim, max_tile=MAX_ROW_TILE):
    """Return (padded_dim, tile).

    Small dims: one full block (padded to 8; full-array-dim exemption covers the
    (8,128) rule). Large dims: 256-row tiles (multiple of 128, so the edge axis
    is legal as the last dim of an incidence block).
    """
    if dim <= max_tile:
        p = _round_up(dim, 8)
        return p, p
    return _round_up(dim, max_tile), max_tile


def _pad_rows(a, rows):
    pad = rows - a.shape[0]
    return a if pad == 0 else jnp.pad(a, ((0, pad), (0, 0)))


def _pad2(a, rows, cols):
    return jnp.pad(a, ((0, rows - a.shape[0]), (0, cols - a.shape[1])))


# ------------------------------ Pallas kernels -------------------------------
def _row_mlp_kernel(x_ref, wa_ref, wb_ref, h_ref):
    """h = relu( relu(x @ wa) @ wb ), bf16 MXU operands, f32 accumulation."""
    x = x_ref[...].astype(jnp.bfloat16)
    t = jnp.dot(x, wa_ref[...], preferred_element_type=jnp.float32)
    t = jnp.maximum(t, 0.0).astype(jnp.bfloat16)
    t = jnp.dot(t, wb_ref[...], preferred_element_type=jnp.float32)
    h_ref[...] = jnp.maximum(t, 0.0).astype(h_ref.dtype)


def _make_agg_post_mlp_kernel(transpose_inc):
    """out = relu( relu( (B^T@h  or  B@h) @ wc ) @ wd ), K-reduction over grid axis 1."""

    def kernel(inc_ref, h_ref, wc_ref, wd_ref, out_ref, acc_ref):
        k = pl.program_id(1)

        @pl.when(k == 0)
        def _init():
            acc_ref[...] = jnp.zeros_like(acc_ref)

        if transpose_inc:
            # inc block is (K_tile, OUT_tile): contract axis 0 with axis 0 of h
            partial = lax.dot_general(
                inc_ref[...], h_ref[...],
                dimension_numbers=(((0,), (0,)), ((), ())),
                preferred_element_type=jnp.float32)
        else:
            # inc block is (OUT_tile, K_tile): plain matmul
            partial = jnp.dot(inc_ref[...], h_ref[...],
                              preferred_element_type=jnp.float32)
        acc_ref[...] += partial

        @pl.when(k == pl.num_programs(1) - 1)
        def _finalize():
            a = acc_ref[...].astype(jnp.bfloat16)
            t = jnp.dot(a, wc_ref[...], preferred_element_type=jnp.float32)
            t = jnp.maximum(t, 0.0).astype(jnp.bfloat16)
            t = jnp.dot(t, wd_ref[...], preferred_element_type=jnp.float32)
            out_ref[...] = jnp.maximum(t, 0.0).astype(out_ref.dtype)

    return kernel


# ------------------------------ pallas_call wrappers --------------------------
def _row_mlp(x, wa, wb, row_tile):
    rows, c_in = x.shape
    hid = wb.shape[1]
    grid = (rows // row_tile,)
    flops = 2 * rows * c_in * hid + 2 * rows * hid * hid
    bytes_accessed = (x.size * x.dtype.itemsize + wa.size * 2 + wb.size * 2
                      + rows * hid * 2)
    return pl.pallas_call(
        _row_mlp_kernel,
        out_shape=jax.ShapeDtypeStruct((rows, hid), jnp.bfloat16),
        grid_spec=pltpu.PrefetchScalarGridSpec(
            num_scalar_prefetch=0,
            grid=grid,
            in_specs=[
                pl.BlockSpec((row_tile, c_in), lambda i: (i, 0)),
                pl.BlockSpec((c_in, hid), lambda i: (0, 0)),   # resident weights
                pl.BlockSpec((hid, hid), lambda i: (0, 0)),
            ],
            out_specs=pl.BlockSpec((row_tile, hid), lambda i: (i, 0)),
        ),
        compiler_params=pltpu.CompilerParams(
            dimension_semantics=("parallel",),
            vmem_limit_bytes=VMEM_LIMIT_BYTES,
        ),
        cost_estimate=pl.CostEstimate(
            flops=flops, transcendentals=0, bytes_accessed=bytes_accessed),
    )(x, wa, wb)


def _aggregate_post_mlp(inc, h, wc, wd, *, transpose_inc, out_tile, k_tile):
    if transpose_inc:
        k_dim, out_rows = inc.shape
        inc_spec = pl.BlockSpec((k_tile, out_tile), lambda o, k: (k, o))
    else:
        out_rows, k_dim = inc.shape
        inc_spec = pl.BlockSpec((out_tile, k_tile), lambda o, k: (o, k))
    hid = wd.shape[1]
    grid = (out_rows // out_tile, k_dim // k_tile)
    flops = 2 * out_rows * k_dim * hid + 4 * out_rows * hid * hid
    bytes_accessed = (inc.size * 2 + h.size * 2 * grid[0]
                      + wc.size * 2 + wd.size * 2 + out_rows * hid * 4)
    return pl.pallas_call(
        _make_agg_post_mlp_kernel(transpose_inc),
        out_shape=jax.ShapeDtypeStruct((out_rows, hid), jnp.float32),
        grid_spec=pltpu.PrefetchScalarGridSpec(
            num_scalar_prefetch=0,
            grid=grid,
            in_specs=[
                inc_spec,
                pl.BlockSpec((k_tile, hid), lambda o, k: (k, 0)),
                pl.BlockSpec((hid, hid), lambda o, k: (0, 0)),  # resident weights
                pl.BlockSpec((hid, hid), lambda o, k: (0, 0)),
            ],
            out_specs=pl.BlockSpec((out_tile, hid), lambda o, k: (o, 0)),
            scratch_shapes=[pltpu.VMEM((out_tile, hid), jnp.float32)],
        ),
        compiler_params=pltpu.CompilerParams(
            dimension_semantics=("parallel", "arbitrary"),
            vmem_limit_bytes=VMEM_LIMIT_BYTES,
        ),
        cost_estimate=pl.CostEstimate(
            flops=flops, transcendentals=0, bytes_accessed=bytes_accessed),
    )(inc, h, wc, wd)


# ------------------------------ forward (glue) --------------------------------
def allset_forward_pallas(x_0, incidence_1, params_bf16):
    n, _ = x_0.shape
    e = incidence_1.shape[1]
    hid = params_bf16[0]["vw2"].shape[1]

    n_p, tile_n = _pad_and_tile(n)
    e_p, tile_e = _pad_and_tile(e)

    # 0/1 incidence is exact in bf16; stored once (no explicit transpose).
    inc = _pad2(incidence_1.astype(jnp.bfloat16), n_p, e_p)
    x = _pad_rows(x_0.astype(jnp.float32), n_p)

    x1 = None
    for lp in params_bf16:
        # vertex -> hyperedge:  x1 = relu(dec( B^T @ relu(enc(x0)) ))
        h = _row_mlp(x, lp["vw1"], lp["vw2"], tile_n)                 # (n_p, H) bf16
        x1 = _aggregate_post_mlp(inc, h, lp["vw3"], lp["vw4"],
                                 transpose_inc=True,
                                 out_tile=tile_e, k_tile=tile_n)      # (e_p, H) f32
        # hyperedge -> vertex:  x0 = relu(dec( B @ relu(enc(x1)) ))
        h2 = _row_mlp(x1, lp["ew1"], lp["ew2"], tile_e)               # (e_p, H) bf16
        x = _aggregate_post_mlp(inc, h2, lp["ew3"], lp["ew4"],
                                transpose_inc=False,
                                out_tile=tile_n, k_tile=tile_e)       # (n_p, H) f32
    return x[:n, :hid], x1[:e, :hid]


# ------------------------------ params & references --------------------------
def init_params(key, in_channels, hidden_channels, n_layers):
    """Deterministic glorot-style init for all Linear weights (bias=False)."""
    def glorot(k, shape):
        fan_in, fan_out = shape
        scale = jnp.sqrt(2.0 / (fan_in + fan_out)).astype(jnp.float32)
        return scale * jax.random.normal(k, shape, dtype=jnp.float32)

    params = []
    for i in range(n_layers):
        c_in = in_channels if i == 0 else hidden_channels
        key, *ks = jax.random.split(key, 9)
        params.append({
            "vw1": glorot(ks[0], (c_in, hidden_channels)),
            "vw2": glorot(ks[1], (hidden_channels, hidden_channels)),
            "vw3": glorot(ks[2], (hidden_channels, hidden_channels)),
            "vw4": glorot(ks[3], (hidden_channels, hidden_channels)),
            "ew1": glorot(ks[4], (hidden_channels, hidden_channels)),
            "ew2": glorot(ks[5], (hidden_channels, hidden_channels)),
            "ew3": glorot(ks[6], (hidden_channels, hidden_channels)),
            "ew4": glorot(ks[7], (hidden_channels, hidden_channels)),
        })
    return params


def _mlp2_bf16(h, wa, wb):
    t = jnp.dot(h.astype(jnp.bfloat16), wa.astype(jnp.bfloat16),
                preferred_element_type=jnp.float32)
    t = jnp.maximum(t, 0.0)
    t = jnp.dot(t.astype(jnp.bfloat16), wb.astype(jnp.bfloat16),
                preferred_element_type=jnp.float32)
    return jnp.maximum(t, 0.0)


def allset_forward_reference_bf16(x_0, incidence_1, params):
    """Pure-JAX reference with the same bf16-operand / f32-accumulate matmuls."""
    b = incidence_1.astype(jnp.bfloat16)
    x = x_0.astype(jnp.float32)
    x1 = None
    for lp in params:
        h = _mlp2_bf16(x, lp["vw1"], lp["vw2"])
        a = lax.dot_general(b, h.astype(jnp.bfloat16),
                            dimension_numbers=(((0,), (0,)), ((), ())),
                            preferred_element_type=jnp.float32)      # B^T @ h
        x1 = _mlp2_bf16(a, lp["vw3"], lp["vw4"])
        h2 = _mlp2_bf16(x1, lp["ew1"], lp["ew2"])
        a2 = jnp.dot(b, h2.astype(jnp.bfloat16),
                     preferred_element_type=jnp.float32)             # B @ h2
        x = _mlp2_bf16(a2, lp["ew3"], lp["ew4"])
    return x, x1


def allset_forward_reference_f32(x_0, incidence_1, params):
    """Full-precision (f32) reference mirroring the PyTorch eval-mode forward."""
    def mlp2(h, wa, wb):
        t = jnp.maximum(jnp.dot(h, wa, precision="highest"), 0.0)
        return jnp.maximum(jnp.dot(t, wb, precision="highest"), 0.0)

    b = incidence_1.astype(jnp.float32)
    x = x_0.astype(jnp.float32)
    x1 = None
    for lp in params:
        x1 = mlp2(jnp.dot(b.T, mlp2(x, lp["vw1"], lp["vw2"]), precision="highest"),
                  lp["vw3"], lp["vw4"])
        x = mlp2(jnp.dot(b, mlp2(x1, lp["ew1"], lp["ew2"]), precision="highest"),
                 lp["ew3"], lp["ew4"])
    return x, x1


# ---------------------------------- main --------------------------------------
if __name__ == "__main__":
    N_NODES = 16
    N_EDGES = 10
    IN_CHANNELS = 8
    HIDDEN_CHANNELS = 32
    N_LAYERS = 2

    key = jax.random.PRNGKey(0)
    k_x, k_inc, k_par = jax.random.split(key, 3)

    x_0 = jax.random.normal(k_x, (N_NODES, IN_CHANNELS), dtype=jnp.float32)
    incidence_1 = (
        jax.random.uniform(k_inc, (N_NODES, N_EDGES)) < 0.4
    ).astype(jnp.float32)  # dense 0/1 incidence (nodes x hyperedges)

    params = init_params(k_par, IN_CHANNELS, HIDDEN_CHANNELS, N_LAYERS)
    # Cast weights to bf16 once (hoisted out of the per-call path).
    params_bf16 = jax.tree_util.tree_map(lambda w: w.astype(jnp.bfloat16), params)

    fwd = jax.jit(allset_forward_pallas)
    x0_out, x1_out = fwd(x_0, incidence_1, params_bf16)
    x0_out = jax.block_until_ready(x0_out)
    x1_out = jax.block_until_ready(x1_out)

    assert x0_out.shape == (N_NODES, HIDDEN_CHANNELS)
    assert x1_out.shape == (N_EDGES, HIDDEN_CHANNELS)

    # Tight check vs. a reference using the exact same bf16-MXU / f32-acc math.
    x0_bref, x1_bref = allset_forward_reference_bf16(x_0, incidence_1, params)
    assert jnp.allclose(x0_out, x0_bref, rtol=1e-2, atol=1e-2)
    assert jnp.allclose(x1_out, x1_bref, rtol=1e-2, atol=1e-2)

    # Sanity check vs. the full-precision f32 reference (bf16 rounding tolerance).
    x0_fref, x1_fref = allset_forward_reference_f32(x_0, incidence_1, params)
    assert jnp.allclose(x0_out, x0_fref, rtol=1e-1, atol=1e-1)
    assert jnp.allclose(x1_out, x1_fref, rtol=1e-1, atol=1e-1)

    print("KERNEL_OK")
</pallas_src>

<mosaic_0001>
module attributes {stable_mosaic.version = 11 : i64} {
  func.func @_row_mlp_kernel(%arg0: i32, %arg1: memref<16x8xf32, #tpu.memory_space<vmem>>, %arg2: memref<8x32xbf16, #tpu.memory_space<vmem>>, %arg3: memref<32x32xbf16, #tpu.memory_space<vmem>>, %arg4: memref<16x32xbf16, #tpu.memory_space<vmem>>) attributes {dimension_semantics = [#tpu.dimension_semantics<parallel>], iteration_bounds = array<i64: 1>, scalar_prefetch = 0 : i64, scratch_operands = 0 : i64, tpu.core_type = #tpu.core_type<tc>, window_params = [{transform_indices = @transform_0, window_bounds = array<i64: 16, 8>}, {pipeline_mode = #tpu.pipeline_mode<synchronous>, transform_indices = @transform_1, window_bounds = array<i64: 8, 32>}, {pipeline_mode = #tpu.pipeline_mode<synchronous>, transform_indices = @transform_2, window_bounds = array<i64: 32, 32>}, {transform_indices = @transform_3, window_bounds = array<i64: 16, 32>}]} {
    %c0 = arith.constant 0 : index
    %c0_0 = arith.constant 0 : index
    %0 = vector.load %arg1[%c0, %c0_0] : memref<16x8xf32, #tpu.memory_space<vmem>>, vector<16x8xf32>
    %1 = arith.truncf %0 : vector<16x8xf32> to vector<16x8xbf16>
    %c0_1 = arith.constant 0 : index
    %c0_2 = arith.constant 0 : index
    %2 = vector.load %arg2[%c0_1, %c0_2] : memref<8x32xbf16, #tpu.memory_space<vmem>>, vector<8x32xbf16>
    %cst = arith.constant dense<0.000000e+00> : vector<16x32xf32>
    %3 = tpu.matmul %1, %2, %cst {dimension_numbers = #tpu.dot_dimension_numbers<[1], [0], [0], [1], [0, 0, 1, 1], [], []>} : vector<16x8xbf16>, vector<8x32xbf16>, vector<16x32xf32> -> vector<16x32xf32>
    %cst_3 = arith.constant 0.000000e+00 : f32
    %4 = vector.broadcast %cst_3 : f32 to vector<16x32xf32>
    %5 = arith.maximumf %3, %4 : vector<16x32xf32>
    %6 = arith.truncf %5 : vector<16x32xf32> to vector<16x32xbf16>
    %c0_4 = arith.constant 0 : index
    %c0_5 = arith.constant 0 : index
    %7 = vector.load %arg3[%c0_4, %c0_5] : memref<32x32xbf16, #tpu.memory_space<vmem>>, vector<32x32xbf16>
    %cst_6 = arith.constant dense<0.000000e+00> : vector<16x32xf32>
    %8 = tpu.matmul %6, %7, %cst_6 {dimension_numbers = #tpu.dot_dimension_numbers<[1], [0], [0], [1], [0, 0, 1, 1], [], []>} : vector<16x32xbf16>, vector<32x32xbf16>, vector<16x32xf32> -> vector<16x32xf32>
    %cst_7 = arith.constant 0.000000e+00 : f32
    %9 = vector.broadcast %cst_7 : f32 to vector<16x32xf32>
    %10 = arith.maximumf %8, %9 : vector<16x32xf32>
    %11 = arith.truncf %10 : vector<16x32xf32> to vector<16x32xbf16>
    %c0_8 = arith.constant 0 : index
    %c0_9 = arith.constant 0 : index
    %12 = vector.load %arg4[%c0_8, %c0_9] : memref<16x32xbf16, #tpu.memory_space<vmem>>, vector<16x32xbf16>
    tpu.vector_store %arg4[%c0_8, %c0_9], %11 {strides = array<i32>} : memref<16x32xbf16, #tpu.memory_space<vmem>>, vector<16x32xbf16>,
    return
  }
  func.func @transform_0(%arg0: i32) -> (i32, i32) {
    %c0_i32 = arith.constant 0 : i32
    %c0_i32_0 = arith.constant 0 : i32
    return %arg0, %c0_i32 : i32, i32
  }
  func.func @transform_1(%arg0: i32) -> (i32, i32) {
    %c0_i32 = arith.constant 0 : i32
    %c0_i32_0 = arith.constant 0 : i32
    %c0_i32_1 = arith.constant 0 : i32
    return %c0_i32, %c0_i32_0 : i32, i32
  }
  func.func @transform_2(%arg0: i32) -> (i32, i32) {
    %c0_i32 = arith.constant 0 : i32
    %c0_i32_0 = arith.constant 0 : i32
    %c0_i32_1 = arith.constant 0 : i32
    return %c0_i32, %c0_i32_0 : i32, i32
  }
  func.func @transform_3(%arg0: i32) -> (i32, i32) {
    %c0_i32 = arith.constant 0 : i32
    %c0_i32_0 = arith.constant 0 : i32
    return %arg0, %c0_i32 : i32, i32
  }
}

module attributes {stable_mosaic.version = 11 : i64} {
  func.func @kernel(%arg0: i32, %arg1: i32, %arg2: memref<16x16xbf16, #tpu.memory_space<vmem>>, %arg3: memref<16x32xbf16, #tpu.memory_space<vmem>>, %arg4: memref<32x32xbf16, #tpu.memory_space<vmem>>, %arg5: memref<32x32xbf16, #tpu.memory_space<vmem>>, %arg6: memref<16x32xf32, #tpu.memory_space<vmem>>, %arg7: memref<16x32xf32, #tpu.memory_space<vmem>>) attributes {dimension_semantics = [#tpu.dimension_semantics<parallel>, #tpu.dimension_semantics<arbitrary>], iteration_bounds = array<i64: 1, 1>, scalar_prefetch = 0 : i64, scratch_operands = 1 : i64, tpu.core_type = #tpu.core_type<tc>, window_params = [{transform_indices = @transform_0, window_bounds = array<i64: 16, 16>}, {transform_indices = @transform_1, window_bounds = array<i64: 16, 32>}, {pipeline_mode = #tpu.pipeline_mode<synchronous>, transform_indices = @transform_2, window_bounds = array<i64: 32, 32>}, {pipeline_mode = #tpu.pipeline_mode<synchronous>, transform_indices = @transform_3, window_bounds = array<i64: 32, 32>}, {transform_indices = @transform_4, window_bounds = array<i64: 16, 32>}]} {
    %c0_i32 = arith.constant 0 : i32
    %0 = arith.cmpi eq, %arg1, %c0_i32 : i32
    %1 = arith.extui %0 : i1 to i32
    %c0_i32_0 = arith.constant 0 : i32
    %2 = arith.cmpi ne, %1, %c0_i32_0 : i32
    scf.if %2 {
      %cst_10 = arith.constant 0.000000e+00 : f32
      %12 = vector.broadcast %cst_10 : f32 to vector<16x32xf32>
      %c0_11 = arith.constant 0 : index
      %c0_12 = arith.constant 0 : index
      %13 = vector.load %arg7[%c0_11, %c0_12] : memref<16x32xf32, #tpu.memory_space<vmem>>, vector<16x32xf32>
      tpu.vector_store %arg7[%c0_11, %c0_12], %12 {strides = array<i32>} : memref<16x32xf32, #tpu.memory_space<vmem>>, vector<16x32xf32>,
    } else {
    }
    %c0 = arith.constant 0 : index
    %c0_1 = arith.constant 0 : index
    %3 = vector.load %arg2[%c0, %c0_1] : memref<16x16xbf16, #tpu.memory_space<vmem>>, vector<16x16xbf16>
    %c0_2 = arith.constant 0 : index
    %c0_3 = arith.constant 0 : index
    %4 = vector.load %arg3[%c0_2, %c0_3] : memref<16x32xbf16, #tpu.memory_space<vmem>>, vector<16x32xbf16>
    %cst = arith.constant dense<0.000000e+00> : vector<16x32xf32>
    %5 = tpu.matmul %3, %4, %cst {dimension_numbers = #tpu.dot_dimension_numbers<[1], [0], [0], [1], [0, 0, 1, 1], [], []>} : vector<16x16xbf16>, vector<16x32xbf16>, vector<16x32xf32> -> vector<16x32xf32>
    %c0_4 = arith.constant 0 : index
    %c0_5 = arith.constant 0 : index
    %6 = vector.load %arg7[%c0_4, %c0_5] : memref<16x32xf32, #tpu.memory_space<vmem>>, vector<16x32xf32>
    %7 = arith.addf %6, %5 : vector<16x32xf32>
    %c0_6 = arith.constant 0 : index
    %c0_7 = arith.constant 0 : index
    %8 = vector.load %arg7[%c0_6, %c0_7] : memref<16x32xf32, #tpu.memory_space<vmem>>, vector<16x32xf32>
    tpu.vector_store %arg7[%c0_6, %c0_7], %7 {strides = array<i32>} : memref<16x32xf32, #tpu.memory_space<vmem>>, vector<16x32xf32>,
    %c0_i32_8 = arith.constant 0 : i32
    %9 = arith.cmpi eq, %arg1, %c0_i32_8 : i32
    %10 = arith.extui %9 : i1 to i32
    %c0_i32_9 = arith.constant 0 : i32
    %11 = arith.cmpi ne, %10, %c0_i32_9 : i32
    scf.if %11 {
      %c0_10 = arith.constant 0 : index
      %c0_11 = arith.constant 0 : index
      %12 = vector.load %arg7[%c0_10, %c0_11] : memref<16x32xf32, #tpu.memory_space<vmem>>, vector<16x32xf32>
      %13 = arith.truncf %12 : vector<16x32xf32> to vector<16x32xbf16>
      %c0_12 = arith.constant 0 : index
      %c0_13 = arith.constant 0 : index
      %14 = vector.load %arg4[%c0_12, %c0_13] : memref<32x32xbf16, #tpu.memory_space<vmem>>, vector<32x32xbf16>
      %cst_14 = arith.constant dense<0.000000e+00> : vector<16x32xf32>
      %15 = tpu.matmul %13, %14, %cst_14 {dimension_numbers = #tpu.dot_dimension_numbers<[1], [0], [0], [1], [0, 0, 1, 1], [], []>} : vector<16x32xbf16>, vector<32x32xbf16>, vector<16x32xf32> -> vector<16x32xf32>
      %cst_15 = arith.constant 0.000000e+00 : f32
      %16 = vector.broadcast %cst_15 : f32 to vector<16x32xf32>
      %17 = arith.maximumf %15, %16 : vector<16x32xf32>
      %18 = arith.truncf %17 : vector<16x32xf32> to vector<16x32xbf16>
      %c0_16 = arith.constant 0 : index
      %c0_17 = arith.constant 0 : index
      %19 = vector.load %arg5[%c0_16, %c0_17] : memref<32x32xbf16, #tpu.memory_space<vmem>>, vector<32x32xbf16>
      %cst_18 = arith.constant dense<0.000000e+00> : vector<16x32xf32>
      %20 = tpu.matmul %18, %19, %cst_18 {dimension_numbers = #tpu.dot_dimension_numbers<[1], [0], [0], [1], [0, 0, 1, 1], [], []>} : vector<16x32xbf16>, vector<32x32xbf16>, vector<16x32xf32> -> vector<16x32xf32>
      %cst_19 = arith.constant 0.000000e+00 : f32
      %21 = vector.broadcast %cst_19 : f32 to vector<16x32xf32>
      %22 = arith.maximumf %20, %21 : vector<16x32xf32>
      %c0_20 = arith.constant 0 : index
      %c0_21 = arith.constant 0 : index
      %23 = vector.load %arg6[%c0_20, %c0_21] : memref<16x32xf32, #tpu.memory_space<vmem>>, vector<16x32xf32>
      tpu.vector_store %arg6[%c0_20, %c0_21], %22 {strides = array<i32>} : memref<16x32xf32, #tpu.memory_space<vmem>>, vector<16x32xf32>,
    } else {
    }
    return
  }
  func.func @transform_0(%arg0: i32, %arg1: i32) -> (i32, i32) {
    %c0_i32 = arith.constant 0 : i32
    return %arg0, %arg1 : i32, i32
  }
  func.func @transform_1(%arg0: i32, %arg1: i32) -> (i32, i32) {
    %c0_i32 = arith.constant 0 : i32
    %c0_i32_0 = arith.constant 0 : i32
    return %arg1, %c0_i32 : i32, i32
  }
  func.func @transform_2(%arg0: i32, %arg1: i32) -> (i32, i32) {
    %c0_i32 = arith.constant 0 : i32
    %c0_i32_0 = arith.constant 0 : i32
    %c0_i32_1 = arith.constant 0 : i32
    return %c0_i32, %c0_i32_0 : i32, i32
  }
  func.func @transform_3(%arg0: i32, %arg1: i32) -> (i32, i32) {
    %c0_i32 = arith.constant 0 : i32
    %c0_i32_0 = arith.constant 0 : i32
    %c0_i32_1 = arith.constant 0 : i32
    return %c0_i32, %c0_i32_0 : i32, i32
  }
  func.func @transform_4(%arg0: i32, %arg1: i32) -> (i32, i32) {
    %c0_i32 = arith.constant 0 : i32
    %c0_i32_0 = arith.constant 0 : i32
    return %arg0, %c0_i32 : i32, i32
  }
}

module attributes {stable_mosaic.version = 11 : i64} {
  func.func @kernel(%arg0: i32, %arg1: i32, %arg2: memref<16x16xbf16, #tpu.memory_space<vmem>>, %arg3: memref<16x32xbf16, #tpu.memory_space<vmem>>, %arg4: memref<32x32xbf16, #tpu.memory_space<vmem>>, %arg5: memref<32x32xbf16, #tpu.memory_space<vmem>>, %arg6: memref<16x32xf32, #tpu.memory_space<vmem>>, %arg7: memref<16x32xf32, #tpu.memory_space<vmem>>) attributes {dimension_semantics = [#tpu.dimension_semantics<parallel>, #tpu.dimension_semantics<arbitrary>], iteration_bounds = array<i64: 1, 1>, scalar_prefetch = 0 : i64, scratch_operands = 1 : i64, tpu.core_type = #tpu.core_type<tc>, window_params = [{transform_indices = @transform_0, window_bounds = array<i64: 16, 16>}, {transform_indices = @transform_1, window_bounds = array<i64: 16, 32>}, {pipeline_mode = #tpu.pipeline_mode<synchronous>, transform_indices = @transform_2, window_bounds = array<i64: 32, 32>}, {pipeline_mode = #tpu.pipeline_mode<synchronous>, transform_indices = @transform_3, window_bounds = array<i64: 32, 32>}, {transform_indices = @transform_4, window_bounds = array<i64: 16, 32>}]} {
    %c0_i32 = arith.constant 0 : i32
    %0 = arith.cmpi eq, %arg1, %c0_i32 : i32
    %1 = arith.extui %0 : i1 to i32
    %c0_i32_0 = arith.constant 0 : i32
    %2 = arith.cmpi ne, %1, %c0_i32_0 : i32
    scf.if %2 {
      %cst_10 = arith.constant 0.000000e+00 : f32
      %12 = vector.broadcast %cst_10 : f32 to vector<16x32xf32>
      %c0_11 = arith.constant 0 : index
      %c0_12 = arith.constant 0 : index
      %13 = vector.load %arg7[%c0_11, %c0_12] : memref<16x32xf32, #tpu.memory_space<vmem>>, vector<16x32xf32>
      tpu.vector_store %arg7[%c0_11, %c0_12], %12 {strides = array<i32>} : memref<16x32xf32, #tpu.memory_space<vmem>>, vector<16x32xf32>,
    } else {
    }
    %c0 = arith.constant 0 : index
    %c0_1 = arith.constant 0 : index
    %3 = vector.load %arg2[%c0, %c0_1] : memref<16x16xbf16, #tpu.memory_space<vmem>>, vector<16x16xbf16>
    %c0_2 = arith.constant 0 : index
    %c0_3 = arith.constant 0 : index
    %4 = vector.load %arg3[%c0_2, %c0_3] : memref<16x32xbf16, #tpu.memory_space<vmem>>, vector<16x32xbf16>
    %cst = arith.constant dense<0.000000e+00> : vector<16x32xf32>
    %5 = tpu.matmul %3, %4, %cst {dimension_numbers = #tpu.dot_dimension_numbers<[0], [0], [1], [1], [0, 1, 1, 1], [], []>} : vector<16x16xbf16>, vector<16x32xbf16>, vector<16x32xf32> -> vector<16x32xf32>
    %c0_4 = arith.constant 0 : index
    %c0_5 = arith.constant 0 : index
    %6 = vector.load %arg7[%c0_4, %c0_5] : memref<16x32xf32, #tpu.memory_space<vmem>>, vector<16x32xf32>
    %7 = arith.addf %6, %5 : vector<16x32xf32>
    %c0_6 = arith.constant 0 : index
    %c0_7 = arith.constant 0 : index
    %8 = vector.load %arg7[%c0_6, %c0_7] : memref<16x32xf32, #tpu.memory_space<vmem>>, vector<16x32xf32>
    tpu.vector_store %arg7[%c0_6, %c0_7], %7 {strides = array<i32>} : memref<16x32xf32, #tpu.memory_space<vmem>>, vector<16x32xf32>,
    %c0_i32_8 = arith.constant 0 : i32
    %9 = arith.cmpi eq, %arg1, %c0_i32_8 : i32
    %10 = arith.extui %9 : i1 to i32
    %c0_i32_9 = arith.constant 0 : i32
    %11 = arith.cmpi ne, %10, %c0_i32_9 : i32
    scf.if %11 {
      %c0_10 = arith.constant 0 : index
      %c0_11 = arith.constant 0 : index
      %12 = vector.load %arg7[%c0_10, %c0_11] : memref<16x32xf32, #tpu.memory_space<vmem>>, vector<16x32xf32>
      %13 = arith.truncf %12 : vector<16x32xf32> to vector<16x32xbf16>
      %c0_12 = arith.constant 0 : index
      %c0_13 = arith.constant 0 : index
      %14 = vector.load %arg4[%c0_12, %c0_13] : memref<32x32xbf16, #tpu.memory_space<vmem>>, vector<32x32xbf16>
      %cst_14 = arith.constant dense<0.000000e+00> : vector<16x32xf32>
      %15 = tpu.matmul %13, %14, %cst_14 {dimension_numbers = #tpu.dot_dimension_numbers<[1], [0], [0], [1], [0, 0, 1, 1], [], []>} : vector<16x32xbf16>, vector<32x32xbf16>, vector<16x32xf32> -> vector<16x32xf32>
      %cst_15 = arith.constant 0.000000e+00 : f32
      %16 = vector.broadcast %cst_15 : f32 to vector<16x32xf32>
      %17 = arith.maximumf %15, %16 : vector<16x32xf32>
      %18 = arith.truncf %17 : vector<16x32xf32> to vector<16x32xbf16>
      %c0_16 = arith.constant 0 : index
      %c0_17 = arith.constant 0 : index
      %19 = vector.load %arg5[%c0_16, %c0_17] : memref<32x32xbf16, #tpu.memory_space<vmem>>, vector<32x32xbf16>
      %cst_18 = arith.constant dense<0.000000e+00> : vector<16x32xf32>
      %20 = tpu.matmul %18, %19, %cst_18 {dimension_numbers = #tpu.dot_dimension_numbers<[1], [0], [0], [1], [0, 0, 1, 1], [], []>} : vector<16x32xbf16>, vector<32x32xbf16>, vector<16x32xf32> -> vector<16x32xf32>
      %cst_19 = arith.constant 0.000000e+00 : f32
      %21 = vector.broadcast %cst_19 : f32 to vector<16x32xf32>
      %22 = arith.maximumf %20, %21 : vector<16x32xf32>
      %c0_20 = arith.constant 0 : index
      %c0_21 = arith.constant 0 : index
      %23 = vector.load %arg6[%c0_20, %c0_21] : memref<16x32xf32, #tpu.memory_space<vmem>>, vector<16x32xf32>
      tpu.vector_store %arg6[%c0_20, %c0_21], %22 {strides = array<i32>} : memref<16x32xf32, #tpu.memory_space<vmem>>, vector<16x32xf32>,
    } else {
    }
    return
  }
  func.func @transform_0(%arg0: i32, %arg1: i32) -> (i32, i32) {
    %c0_i32 = arith.constant 0 : i32
    return %arg1, %arg0 : i32, i32
  }
  func.func @transform_1(%arg0: i32, %arg1: i32) -> (i32, i32) {
    %c0_i32 = arith.constant 0 : i32
    %c0_i32_0 = arith.constant 0 : i32
    return %arg1, %c0_i32 : i32, i32
  }
  func.func @transform_2(%arg0: i32, %arg1: i32) -> (i32, i32) {
    %c0_i32 = arith.constant 0 : i32
    %c0_i32_0 = arith.constant 0 : i32
    %c0_i32_1 = arith.constant 0 : i32
    return %c0_i32, %c0_i32_0 : i32, i32
  }
  func.func @transform_3(%arg0: i32, %arg1: i32) -> (i32, i32) {
    %c0_i32 = arith.constant 0 : i32
    %c0_i32_0 = arith.constant 0 : i32
    %c0_i32_1 = arith.constant 0 : i32
    return %c0_i32, %c0_i32_0 : i32, i32
  }
  func.func @transform_4(%arg0: i32, %arg1: i32) -> (i32, i32) {
    %c0_i32 = arith.constant 0 : i32
    %c0_i32_0 = arith.constant 0 : i32
    return %arg0, %c0_i32 : i32, i32
  }
}

module attributes {stable_mosaic.version = 11 : i64} {
  func.func @_row_mlp_kernel(%arg0: i32, %arg1: memref<16x32xf32, #tpu.memory_space<vmem>>, %arg2: memref<32x32xbf16, #tpu.memory_space<vmem>>, %arg3: memref<32x32xbf16, #tpu.memory_space<vmem>>, %arg4: memref<16x32xbf16, #tpu.memory_space<vmem>>) attributes {dimension_semantics = [#tpu.dimension_semantics<parallel>], iteration_bounds = array<i64: 1>, scalar_prefetch = 0 : i64, scratch_operands = 0 : i64, tpu.core_type = #tpu.core_type<tc>, window_params = [{transform_indices = @transform_0, window_bounds = array<i64: 16, 32>}, {pipeline_mode = #tpu.pipeline_mode<synchronous>, transform_indices = @transform_1, window_bounds = array<i64: 32, 32>}, {pipeline_mode = #tpu.pipeline_mode<synchronous>, transform_indices = @transform_2, window_bounds = array<i64: 32, 32>}, {transform_indices = @transform_3, window_bounds = array<i64: 16, 32>}]} {
    %c0 = arith.constant 0 : index
    %c0_0 = arith.constant 0 : index
    %0 = vector.load %arg1[%c0, %c0_0] : memref<16x32xf32, #tpu.memory_space<vmem>>, vector<16x32xf32>
    %1 = arith.truncf %0 : vector<16x32xf32> to vector<16x32xbf16>
    %c0_1 = arith.constant 0 : index
    %c0_2 = arith.constant 0 : index
    %2 = vector.load %arg2[%c0_1, %c0_2] : memref<32x32xbf16, #tpu.memory_space<vmem>>, vector<32x32xbf16>
    %cst = arith.constant dense<0.000000e+00> : vector<16x32xf32>
    %3 = tpu.matmul %1, %2, %cst {dimension_numbers = #tpu.dot_dimension_numbers<[1], [0], [0], [1], [0, 0, 1, 1], [], []>} : vector<16x32xbf16>, vector<32x32xbf16>, vector<16x32xf32> -> vector<16x32xf32>
    %cst_3 = arith.constant 0.000000e+00 : f32
    %4 = vector.broadcast %cst_3 : f32 to vector<16x32xf32>
    %5 = arith.maximumf %3, %4 : vector<16x32xf32>
    %6 = arith.truncf %5 : vector<16x32xf32> to vector<16x32xbf16>
    %c0_4 = arith.constant 0 : index
    %c0_5 = arith.constant 0 : index
    %7 = vector.load %arg3[%c0_4, %c0_5] : memref<32x32xbf16, #tpu.memory_space<vmem>>, vector<32x32xbf16>
    %cst_6 = arith.constant dense<0.000000e+00> : vector<16x32xf32>
    %8 = tpu.matmul %6, %7, %cst_6 {dimension_numbers = #tpu.dot_dimension_numbers<[1], [0], [0], [1], [0, 0, 1, 1], [], []>} : vector<16x32xbf16>, vector<32x32xbf16>, vector<16x32xf32> -> vector<16x32xf32>
    %cst_7 = arith.constant 0.000000e+00 : f32
    %9 = vector.broadcast %cst_7 : f32 to vector<16x32xf32>
    %10 = arith.maximumf %8, %9 : vector<16x32xf32>
    %11 = arith.truncf %10 : vector<16x32xf32> to vector<16x32xbf16>
    %c0_8 = arith.constant 0 : index
    %c0_9 = arith.constant 0 : index
    %12 = vector.load %arg4[%c0_8, %c0_9] : memref<16x32xbf16, #tpu.memory_space<vmem>>, vector<16x32xbf16>
    tpu.vector_store %arg4[%c0_8, %c0_9], %11 {strides = array<i32>} : memref<16x32xbf16, #tpu.memory_space<vmem>>, vector<16x32xbf16>,
    return
  }
  func.func @transform_0(%arg0: i32) -> (i32, i32) {
    %c0_i32 = arith.constant 0 : i32
    %c0_i32_0 = arith.constant 0 : i32
    return %arg0, %c0_i32 : i32, i32
  }
  func.func @transform_1(%arg0: i32) -> (i32, i32) {
    %c0_i32 = arith.constant 0 : i32
    %c0_i32_0 = arith.constant 0 : i32
    %c0_i32_1 = arith.constant 0 : i32
    return %c0_i32, %c0_i32_0 : i32, i32
  }
  func.func @transform_2(%arg0: i32) -> (i32, i32) {
    %c0_i32 = arith.constant 0 : i32
    %c0_i32_0 = arith.constant 0 : i32
    %c0_i32_1 = arith.constant 0 : i32
    return %c0_i32, %c0_i32_0 : i32, i32
  }
  func.func @transform_3(%arg0: i32) -> (i32, i32) {
    %c0_i32 = arith.constant 0 : i32
    %c0_i32_0 = arith.constant 0 : i32
    return %arg0, %c0_i32 : i32, i32
  }
}

module attributes {stable_mosaic.version = 11 : i64} {
  func.func @kernel(%arg0: i32, %arg1: i32, %arg2: memref<16x16xbf16, #tpu.memory_space<vmem>>, %arg3: memref<16x32xbf16, #tpu.memory_space<vmem>>, %arg4: memref<32x32xbf16, #tpu.memory_space<vmem>>, %arg5: memref<32x32xbf16, #tpu.memory_space<vmem>>, %arg6: memref<16x32xf32, #tpu.memory_space<vmem>>, %arg7: memref<16x32xf32, #tpu.memory_space<vmem>>) attributes {dimension_semantics = [#tpu.dimension_semantics<parallel>, #tpu.dimension_semantics<arbitrary>], iteration_bounds = array<i64: 1, 1>, scalar_prefetch = 0 : i64, scratch_operands = 1 : i64, tpu.core_type = #tpu.core_type<tc>, window_params = [{transform_indices = @transform_0, window_bounds = array<i64: 16, 16>}, {transform_indices = @transform_1, window_bounds = array<i64: 16, 32>}, {pipeline_mode = #tpu.pipeline_mode<synchronous>, transform_indices = @transform_2, window_bounds = array<i64: 32, 32>}, {pipeline_mode = #tpu.pipeline_mode<synchronous>, transform_indices = @transform_3, window_bounds = array<i64: 32, 32>}, {transform_indices = @transform_4, window_bounds = array<i64: 16, 32>}]} {
    %c0_i32 = arith.constant 0 : i32
    %0 = arith.cmpi eq, %arg1, %c0_i32 : i32
    %1 = arith.extui %0 : i1 to i32
    %c0_i32_0 = arith.constant 0 : i32
    %2 = arith.cmpi ne, %1, %c0_i32_0 : i32
    scf.if %2 {
      %cst_10 = arith.constant 0.000000e+00 : f32
      %12 = vector.broadcast %cst_10 : f32 to vector<16x32xf32>
      %c0_11 = arith.constant 0 : index
      %c0_12 = arith.constant 0 : index
      %13 = vector.load %arg7[%c0_11, %c0_12] : memref<16x32xf32, #tpu.memory_space<vmem>>, vector<16x32xf32>
      tpu.vector_store %arg7[%c0_11, %c0_12], %12 {strides = array<i32>} : memref<16x32xf32, #tpu.memory_space<vmem>>, vector<16x32xf32>,
    } else {
    }
    %c0 = arith.constant 0 : index
    %c0_1 = arith.constant 0 : index
    %3 = vector.load %arg2[%c0, %c0_1] : memref<16x16xbf16, #tpu.memory_space<vmem>>, vector<16x16xbf16>
    %c0_2 = arith.constant 0 : index
    %c0_3 = arith.constant 0 : index
    %4 = vector.load %arg3[%c0_2, %c0_3] : memref<16x32xbf16, #tpu.memory_space<vmem>>, vector<16x32xbf16>
    %cst = arith.constant dense<0.000000e+00> : vector<16x32xf32>
    %5 = tpu.matmul %3, %4, %cst {dimension_numbers = #tpu.dot_dimension_numbers<[1], [0], [0], [1], [0, 0, 1, 1], [], []>} : vector<16x16xbf16>, vector<16x32xbf16>, vector<16x32xf32> -> vector<16x32xf32>
    %c0_4 = arith.constant 0 : index
    %c0_5 = arith.constant 0 : index
    %6 = vector.load %arg7[%c0_4, %c0_5] : memref<16x32xf32, #tpu.memory_space<vmem>>, vector<16x32xf32>
    %7 = arith.addf %6, %5 : vector<16x32xf32>
    %c0_6 = arith.constant 0 : index
    %c0_7 = arith.constant 0 : index
    %8 = vector.load %arg7[%c0_6, %c0_7] : memref<16x32xf32, #tpu.memory_space<vmem>>, vector<16x32xf32>
    tpu.vector_store %arg7[%c0_6, %c0_7], %7 {strides = array<i32>} : memref<16x32xf32, #tpu.memory_space<vmem>>, vector<16x32xf32>,
    %c0_i32_8 = arith.constant 0 : i32
    %9 = arith.cmpi eq, %arg1, %c0_i32_8 : i32
    %10 = arith.extui %9 : i1 to i32
    %c0_i32_9 = arith.constant 0 : i32
    %11 = arith.cmpi ne, %10, %c0_i32_9 : i32
    scf.if %11 {
      %c0_10 = arith.constant 0 : index
      %c0_11 = arith.constant 0 : index
      %12 = vector.load %arg7[%c0_10, %c0_11] : memref<16x32xf32, #tpu.memory_space<vmem>>, vector<16x32xf32>
      %13 = arith.truncf %12 : vector<16x32xf32> to vector<16x32xbf16>
      %c0_12 = arith.constant 0 : index
      %c0_13 = arith.constant 0 : index
      %14 = vector.load %arg4[%c0_12, %c0_13] : memref<32x32xbf16, #tpu.memory_space<vmem>>, vector<32x32xbf16>
      %cst_14 = arith.constant dense<0.000000e+00> : vector<16x32xf32>
      %15 = tpu.matmul %13, %14, %cst_14 {dimension_numbers = #tpu.dot_dimension_numbers<[1], [0], [0], [1], [0, 0, 1, 1], [], []>} : vector<16x32xbf16>, vector<32x32xbf16>, vector<16x32xf32> -> vector<16x32xf32>
      %cst_15 = arith.constant 0.000000e+00 : f32
      %16 = vector.broadcast %cst_15 : f32 to vector<16x32xf32>
      %17 = arith.maximumf %15, %16 : vector<16x32xf32>
      %18 = arith.truncf %17 : vector<16x32xf32> to vector<16x32xbf16>
      %c0_16 = arith.constant 0 : index
      %c0_17 = arith.constant 0 : index
      %19 = vector.load %arg5[%c0_16, %c0_17] : memref<32x32xbf16, #tpu.memory_space<vmem>>, vector<32x32xbf16>
      %cst_18 = arith.constant dense<0.000000e+00> : vector<16x32xf32>
      %20 = tpu.matmul %18, %19, %cst_18 {dimension_numbers = #tpu.dot_dimension_numbers<[1], [0], [0], [1], [0, 0, 1, 1], [], []>} : vector<16x32xbf16>, vector<32x32xbf16>, vector<16x32xf32> -> vector<16x32xf32>
      %cst_19 = arith.constant 0.000000e+00 : f32
      %21 = vector.broadcast %cst_19 : f32 to vector<16x32xf32>
      %22 = arith.maximumf %20, %21 : vector<16x32xf32>
      %c0_20 = arith.constant 0 : index
      %c0_21 = arith.constant 0 : index
      %23 = vector.load %arg6[%c0_20, %c0_21] : memref<16x32xf32, #tpu.memory_space<vmem>>, vector<16x32xf32>
      tpu.vector_store %arg6[%c0_20, %c0_21], %22 {strides = array<i32>} : memref<16x32xf32, #tpu.memory_space<vmem>>, vector<16x32xf32>,
    } else {
    }
    return
  }
  func.func @transform_0(%arg0: i32, %arg1: i32) -> (i32, i32) {
    %c0_i32 = arith.constant 0 : i32
    return %arg0, %arg1 : i32, i32
  }
  func.func @transform_1(%arg0: i32, %arg1: i32) -> (i32, i32) {
    %c0_i32 = arith.constant 0 : i32
    %c0_i32_0 = arith.constant 0 : i32
    return %arg1, %c0_i32 : i32, i32
  }
  func.func @transform_2(%arg0: i32, %arg1: i32) -> (i32, i32) {
    %c0_i32 = arith.constant 0 : i32
    %c0_i32_0 = arith.constant 0 : i32
    %c0_i32_1 = arith.constant 0 : i32
    return %c0_i32, %c0_i32_0 : i32, i32
  }
  func.func @transform_3(%arg0: i32, %arg1: i32) -> (i32, i32) {
    %c0_i32 = arith.constant 0 : i32
    %c0_i32_0 = arith.constant 0 : i32
    %c0_i32_1 = arith.constant 0 : i32
    return %c0_i32, %c0_i32_0 : i32, i32
  }
  func.func @transform_4(%arg0: i32, %arg1: i32) -> (i32, i32) {
    %c0_i32 = arith.constant 0 : i32
    %c0_i32_0 = arith.constant 0 : i32
    return %arg0, %c0_i32 : i32, i32
  }
}

</mosaic_0001>

<llo_original>
// kernel: allset_forward_pallas.8
$region0: #{allset_forward_pallas.8}
  #allocation0 [shape = 'u32[]', space=smem, size = 0x4, offset = 0x4, fixed_abs, tag = 'smem constant byte address 0x4 - core index']
  #allocation1 [shape = 'u32[144,128]{1,0:T(1,128)}', space=vmem, size = 0x12000, scoped, tag = 'internal scratch']
  %s0 = inlined_call_operand.vmem [shape: f32[16,8], index: 0, kind: input, shape index: {}]
  %s1 = inlined_call_operand.vmem [shape: bf16[8,32], index: 1, kind: input, shape index: {}]
  %s2 = inlined_call_operand.vmem [shape: bf16[32,32], index: 2, kind: input, shape index: {}]
  %s3 = inlined_call_operand.vmem [shape: bf16[16,32], index: 3, kind: output, shape index: {}]
  %s4 = sld [smem:[#allocation0]]
  $region22: #{allset_forward_pallas.8} parent=0
    _
  %s6 = ssub.s32 1, %s4
  %s7 = scalar_select 0, %s6, %s4
  // Predicated region
  $region2: #{allset_forward_pallas.8} parent=0 // pred_check
    _
  $region3: #{allset_forward_pallas.8} parent=0 // pred_check_branch
    %9 = sbr.rel (0) target = $region5
  $region4: #{allset_forward_pallas.8} parent=0 // pred_region
    _
  $region5: #{allset_forward_pallas.8} parent=0 // pred_fallthru
    _
  // Predicated region
  $region6: #{allset_forward_pallas.8} parent=0 // pred_check
    _
  $region7: #{allset_forward_pallas.8} parent=0 // pred_check_branch
    %11 = sbr.rel (0) target = $region9
  $region8: #{allset_forward_pallas.8} parent=0 // pred_region
    _
  $region9: #{allset_forward_pallas.8} parent=0 // pred_fallthru
    _
  // Predicated region
  $region10: #{allset_forward_pallas.8} parent=0 // pred_check
    _
  $region11: #{allset_forward_pallas.8} parent=0 // pred_check_branch
    %13 = sbr.rel (0) target = $region13
  $region12: #{allset_forward_pallas.8} parent=0 // pred_region
    _
  $region13: #{allset_forward_pallas.8} parent=0 // pred_fallthru
    _
  %v15 = vld [vmem:[%s0] sm:$0xff]
  %v16 = vld [vmem:[%s0 + $0x8] sm:$0xff]
  %v17 = vpack.c.bf16 %v16, %v15
  %v18 = vld [vmem:[%s1] sm:$0xf]
  %vm19 = vcmask 64512
  %v21 = vsel %vm19, %v17, 0
  %vm23 = vcmask 1043456
  %v25 = vsel %vm23, %v18, 0
  %27 = vmatprep.subr.bf16.mxu0 0
  %28 = vmatpush1.bf16.msra.mxu0 %v25
  %29 = vmatprep.subr.bf16.mxu0 0
  %30 = vmatpush1.bf16.msra.mxu0 0
  %31 = vmatprep.subr.bf16.mxu0 0
  %32 = vmatpush1.bf16.msra.mxu0 0
  %33 = vmatprep.subr.bf16.mxu0 0
  %34 = vmatpush1.bf16.msra.mxu0 0
  %35 = vmatprep.subr.bf16.mxu0 0
  %36 = vmatpush1.bf16.msra.mxu0 0
  %37 = vmatprep.subr.bf16.mxu0 0
  %38 = vmatpush1.bf16.msra.mxu0 0
  %39 = vmatprep.subr.bf16.mxu0 0
  %40 = vmatpush1.bf16.msra.mxu0 0
  %41 = vmatprep.subr.bf16.mxu0 0
  %42 = vmatpush1.bf16.msra.mxu0 0
  %43 = vmatprep.subr.bf16.mxu0 0
  %44 = vmatpush1.bf16.msra.mxu0 0
  %45 = vmatprep.subr.bf16.mxu0 0
  %46 = vmatpush1.bf16.msra.mxu0 0
  %47 = vmatprep.subr.bf16.mxu0 0
  %48 = vmatpush1.bf16.msra.mxu0 0
  %49 = vmatprep.subr.bf16.mxu0 0
  %50 = vmatpush1.bf16.msra.mxu0 0
  %51 = vmatprep.subr.bf16.mxu0 0
  %52 = vmatpush1.bf16.msra.mxu0 0
  %53 = vmatprep.subr.bf16.mxu0 0
  %54 = vmatpush1.bf16.msra.mxu0 0
  %55 = vmatprep.subr.bf16.mxu0 0
  %56 = vmatpush1.bf16.msra.mxu0 0
  %57 = vmatprep.subr.bf16.mxu0 0
  %58 = vmatpush1.bf16.msra.mxu0 0
  %59 = vmatprep.mubr.bf16.mxu0 0
  %60 = vmatmul.mubr.bf16.gmra.mrb[0].mxu0 %v21
  %v61 = vpop.f32.mrb[0].mxu0
  %v62 = vadd.f32 0.0, %v61
  %v63 = vpop.f32.mrb[0].mxu0
  %v64 = vpop.f32.mrb[0].mxu0
  %v65 = vadd.f32 0.0, %v64
  %v66 = vpop.f32.mrb[0].mxu0
  %67 = vdwg.mxu0
  %v68 = vmax.f32 %v62, 0.0
  %v69 = vmax.f32 %v65, 0.0
  %v70 = vpack.c.bf16 %v69, %v68
  %v71 = vld [vmem:[%s2] sm:$0xf]
  %v72 = vld [vmem:[%s2 + $0x4] sm:$0xf]
  %v73 = vld [vmem:[%s2 + $0x8] sm:$0xf]
  %v74 = vld [vmem:[%s2 + $0xc] sm:$0xf]
  %v79 = vunpack.c.l.b16 %v71
  %v80 = vunpack.c.l.b16 %v72
  %v81 = vunpack.c.l.b16 %v73
  %v82 = vunpack.c.l.b16 %v74
  %v83 = vpack.c.b16 %v80, %v79
  %v84 = vpack.c.b16 %v82, %v81
  %vm87 = vcmask 261120
  %v89 = vsel %vm87, %v70, 0
  %91 = vmatprep.subr.bf16.mxu0 0
  %92 = vmatpush1.bf16.msra.mxu0 %v83
  %93 = vmatprep.subr.bf16.mxu0 0
  %94 = vmatpush1.bf16.msra.mxu0 %v84
  %95 = vmatprep.subr.bf16.mxu0 0
  %96 = vmatpush1.bf16.msra.mxu0 0
  %97 = vmatprep.subr.bf16.mxu0 0
  %98 = vmatpush1.bf16.msra.mxu0 0
  %99 = vmatprep.subr.bf16.mxu0 0
  %100 = vmatpush1.bf16.msra.mxu0 0
  %101 = vmatprep.subr.bf16.mxu0 0
  %102 = vmatpush1.bf16.msra.mxu0 0
  %103 = vmatprep.subr.bf16.mxu0 0
  %104 = vmatpush1.bf16.msra.mxu0 0
  %105 = vmatprep.subr.bf16.mxu0 0
  %106 = vmatpush1.bf16.msra.mxu0 0
  %107 = vmatprep.subr.bf16.mxu0 0
  %108 = vmatpush1.bf16.msra.mxu0 0
  %109 = vmatprep.subr.bf16.mxu0 0
  %110 = vmatpush1.bf16.msra.mxu0 0
  %111 = vmatprep.subr.bf16.mxu0 0
  %112 = vmatpush1.bf16.msra.mxu0 0
  %113 = vmatprep.subr.bf16.mxu0 0
  %114 = vmatpush1.bf16.msra.mxu0 0
  %115 = vmatprep.subr.bf16.mxu0 0
  %116 = vmatpush1.bf16.msra.mxu0 0
  %117 = vmatprep.subr.bf16.mxu0 0
  %118 = vmatpush1.bf16.msra.mxu0 0
  %119 = vmatprep.subr.bf16.mxu0 0
  %120 = vmatpush1.bf16.msra.mxu0 0
  %121 = vmatprep.subr.bf16.mxu0 0
  %122 = vmatpush1.bf16.msra.mxu0 0
  %123 = vmatprep.mubr.bf16.mxu0 0
  %124 = vmatmul.mubr.bf16.gmra.mrb[0].mxu0 %v89
  %v125 = vpop.f32.mrb[0].mxu0
  %v126 = vadd.f32 0.0, %v125
  %v127 = vpop.f32.mrb[0].mxu0
  %v128 = vpop.f32.mrb[0].mxu0
  %v129 = vadd.f32 0.0, %v128
  %v130 = vpop.f32.mrb[0].mxu0
  %131 = vdwg.mxu0
  %v132 = vmax.f32 %v126, 0.0
  %v133 = vmax.f32 %v129, 0.0
  %v134 = vpack.c.bf16 %v133, %v132
  %v136 = vunpack.c.l.b16 %v134
  %v137 = vunpack.c.h.b16 %v134
  %v138 = vpack.c.b16 %v136, %v136
  %v139 = vpack.c.b16 %v137, %v137
  %vm142 = vcmask 257024
  %143 = vst.msk [vmem:[%s3] sm:$0xf] %vm142, %v138
  %144 = vst.msk [vmem:[%s3 + $0x4] sm:$0xf] %vm142, %v139
  // Predicated region
  $region14: #{allset_forward_pallas.8} parent=0 // pred_check
    _
  $region15: #{allset_forward_pallas.8} parent=0 // pred_check_branch
    %146 = sbr.rel (0) target = $region17
  $region16: #{allset_forward_pallas.8} parent=0 // pred_region
    _
  $region17: #{allset_forward_pallas.8} parent=0 // pred_fallthru
    _
  // Predicated region
  $region18: #{allset_forward_pallas.8} parent=0 // pred_check
    _
  $region19: #{allset_forward_pallas.8} parent=0 // pred_check_branch
    %148 = sbr.rel (0) target = $region21
  $region20: #{allset_forward_pallas.8} parent=0 // pred_region
    _
  $region21: #{allset_forward_pallas.8} parent=0 // pred_fallthru
    _

// kernel: allset_forward_pallas.10
$region0: #{allset_forward_pallas.10}
  #allocation0 [shape = 'u32[]', space=smem, size = 0x4, offset = 0x4, fixed_abs, tag = 'smem constant byte address 0x4 - core index']
  #allocation1 [shape = 'u32[144,128]{1,0:T(1,128)}', space=vmem, size = 0x12000, scoped, tag = 'internal scratch']
  %s0 = inlined_call_operand.vmem [shape: f32[16,32], index: 0, kind: input, shape index: {}]
  %s1 = inlined_call_operand.vmem [shape: bf16[32,32], index: 1, kind: input, shape index: {}]
  %s2 = inlined_call_operand.vmem [shape: bf16[32,32], index: 2, kind: input, shape index: {}]
  %s3 = inlined_call_operand.vmem [shape: bf16[16,32], index: 3, kind: output, shape index: {}]
  %s4 = sld [smem:[#allocation0]]
  $region22: #{allset_forward_pallas.10} parent=0
    _
  %s6 = ssub.s32 1, %s4
  %s7 = scalar_select 0, %s6, %s4
  // Predicated region
  $region2: #{allset_forward_pallas.10} parent=0 // pred_check
    _
  $region3: #{allset_forward_pallas.10} parent=0 // pred_check_branch
    %9 = sbr.rel (0) target = $region5
  $region4: #{allset_forward_pallas.10} parent=0 // pred_region
    _
  $region5: #{allset_forward_pallas.10} parent=0 // pred_fallthru
    _
  // Predicated region
  $region6: #{allset_forward_pallas.10} parent=0 // pred_check
    _
  $region7: #{allset_forward_pallas.10} parent=0 // pred_check_branch
    %11 = sbr.rel (0) target = $region9
  $region8: #{allset_forward_pallas.10} parent=0 // pred_region
    _
  $region9: #{allset_forward_pallas.10} parent=0 // pred_fallthru
    _
  // Predicated region
  $region10: #{allset_forward_pallas.10} parent=0 // pred_check
    _
  $region11: #{allset_forward_pallas.10} parent=0 // pred_check_branch
    %13 = sbr.rel (0) target = $region13
  $region12: #{allset_forward_pallas.10} parent=0 // pred_region
    _
  $region13: #{allset_forward_pallas.10} parent=0 // pred_fallthru
    _
  %v15 = vld [vmem:[%s0] sm:$0xff]
  %v16 = vld [vmem:[%s0 + $0x8] sm:$0xff]
  %v17 = vpack.c.bf16 %v16, %v15
  %v18 = vld [vmem:[%s1] sm:$0xf]
  %v19 = vld [vmem:[%s1 + $0x4] sm:$0xf]
  %v20 = vld [vmem:[%s1 + $0x8] sm:$0xf]
  %v21 = vld [vmem:[%s1 + $0xc] sm:$0xf]
  %v26 = vunpack.c.l.b16 %v18
  %v27 = vunpack.c.l.b16 %v19
  %v28 = vunpack.c.l.b16 %v20
  %v29 = vunpack.c.l.b16 %v21
  %v30 = vpack.c.b16 %v27, %v26
  %v31 = vpack.c.b16 %v29, %v28
  %vm34 = vcmask 261120
  %v36 = vsel %vm34, %v17, 0
  %38 = vmatprep.subr.bf16.mxu0 0
  %39 = vmatpush1.bf16.msra.mxu0 %v30
  %40 = vmatprep.subr.bf16.mxu0 0
  %41 = vmatpush1.bf16.msra.mxu0 %v31
  %42 = vmatprep.subr.bf16.mxu0 0
  %43 = vmatpush1.bf16.msra.mxu0 0
  %44 = vmatprep.subr.bf16.mxu0 0
  %45 = vmatpush1.bf16.msra.mxu0 0
  %46 = vmatprep.subr.bf16.mxu0 0
  %47 = vmatpush1.bf16.msra.mxu0 0
  %48 = vmatprep.subr.bf16.mxu0 0
  %49 = vmatpush1.bf16.msra.mxu0 0
  %50 = vmatprep.subr.bf16.mxu0 0
  %51 = vmatpush1.bf16.msra.mxu0 0
  %52 = vmatprep.subr.bf16.mxu0 0
  %53 = vmatpush1.bf16.msra.mxu0 0
  %54 = vmatprep.subr.bf16.mxu0 0
  %55 = vmatpush1.bf16.msra.mxu0 0
  %56 = vmatprep.subr.bf16.mxu0 0
  %57 = vmatpush1.bf16.msra.mxu0 0
  %58 = vmatprep.subr.bf16.mxu0 0
  %59 = vmatpush1.bf16.msra.mxu0 0
  %60 = vmatprep.subr.bf16.mxu0 0
  %61 = vmatpush1.bf16.msra.mxu0 0
  %62 = vmatprep.subr.bf16.mxu0 0
  %63 = vmatpush1.bf16.msra.mxu0 0
  %64 = vmatprep.subr.bf16.mxu0 0
  %65 = vmatpush1.bf16.msra.mxu0 0
  %66 = vmatprep.subr.bf16.mxu0 0
  %67 = vmatpush1.bf16.msra.mxu0 0
  %68 = vmatprep.subr.bf16.mxu0 0
  %69 = vmatpush1.bf16.msra.mxu0 0
  %70 = vmatprep.mubr.bf16.mxu0 0
  %71 = vmatmul.mubr.bf16.gmra.mrb[0].mxu0 %v36
  %v72 = vpop.f32.mrb[0].mxu0
  %v73 = vadd.f32 0.0, %v72
  %v74 = vpop.f32.mrb[0].mxu0
  %v75 = vpop.f32.mrb[0].mxu0
  %v76 = vadd.f32 0.0, %v75
  %v77 = vpop.f32.mrb[0].mxu0
  %78 = vdwg.mxu0
  %v79 = vmax.f32 %v73, 0.0
  %v80 = vmax.f32 %v76, 0.0
  %v81 = vpack.c.bf16 %v80, %v79
  %v82 = vld [vmem:[%s2] sm:$0xf]
  %v83 = vld [vmem:[%s2 + $0x4] sm:$0xf]
  %v84 = vld [vmem:[%s2 + $0x8] sm:$0xf]
  %v85 = vld [vmem:[%s2 + $0xc] sm:$0xf]
  %v90 = vunpack.c.l.b16 %v82
  %v91 = vunpack.c.l.b16 %v83
  %v92 = vunpack.c.l.b16 %v84
  %v93 = vunpack.c.l.b16 %v85
  %v94 = vpack.c.b16 %v91, %v90
  %v95 = vpack.c.b16 %v93, %v92
  %v99 = vsel %vm34, %v81, 0
  %101 = vmatprep.subr.bf16.mxu0 0
  %102 = vmatpush1.bf16.msra.mxu0 %v94
  %103 = vmatprep.subr.bf16.mxu0 0
  %104 = vmatpush1.bf16.msra.mxu0 %v95
  %105 = vmatprep.subr.bf16.mxu0 0
  %106 = vmatpush1.bf16.msra.mxu0 0
  %107 = vmatprep.subr.bf16.mxu0 0
  %108 = vmatpush1.bf16.msra.mxu0 0
  %109 = vmatprep.subr.bf16.mxu0 0
  %110 = vmatpush1.bf16.msra.mxu0 0
  %111 = vmatprep.subr.bf16.mxu0 0
  %112 = vmatpush1.bf16.msra.mxu0 0
  %113 = vmatprep.subr.bf16.mxu0 0
  %114 = vmatpush1.bf16.msra.mxu0 0
  %115 = vmatprep.subr.bf16.mxu0 0
  %116 = vmatpush1.bf16.msra.mxu0 0
  %117 = vmatprep.subr.bf16.mxu0 0
  %118 = vmatpush1.bf16.msra.mxu0 0
  %119 = vmatprep.subr.bf16.mxu0 0
  %120 = vmatpush1.bf16.msra.mxu0 0
  %121 = vmatprep.subr.bf16.mxu0 0
  %122 = vmatpush1.bf16.msra.mxu0 0
  %123 = vmatprep.subr.bf16.mxu0 0
  %124 = vmatpush1.bf16.msra.mxu0 0
  %125 = vmatprep.subr.bf16.mxu0 0
  %126 = vmatpush1.bf16.msra.mxu0 0
  %127 = vmatprep.subr.bf16.mxu0 0
  %128 = vmatpush1.bf16.msra.mxu0 0
  %129 = vmatprep.subr.bf16.mxu0 0
  %130 = vmatpush1.bf16.msra.mxu0 0
  %131 = vmatprep.subr.bf16.mxu0 0
  %132 = vmatpush1.bf16.msra.mxu0 0
  %133 = vmatprep.mubr.bf16.mxu0 0
  %134 = vmatmul.mubr.bf16.gmra.mrb[0].mxu0 %v99
  %v135 = vpop.f32.mrb[0].mxu0
  %v136 = vadd.f32 0.0, %v135
  %v137 = vpop.f32.mrb[0].mxu0
  %v138 = vpop.f32.mrb[0].mxu0
  %v139 = vadd.f32 0.0, %v138
  %v140 = vpop.f32.mrb[0].mxu0
  %141 = vdwg.mxu0
  %v142 = vmax.f32 %v136, 0.0
  %v143 = vmax.f32 %v139, 0.0
  %v144 = vpack.c.bf16 %v143, %v142
  %v146 = vunpack.c.l.b16 %v144
  %v147 = vunpack.c.h.b16 %v144
  %v148 = vpack.c.b16 %v146, %v146
  %v149 = vpack.c.b16 %v147, %v147
  %vm152 = vcmask 257024
  %153 = vst.msk [vmem:[%s3] sm:$0xf] %vm152, %v148
  %154 = vst.msk [vmem:[%s3 + $0x4] sm:$0xf] %vm152, %v149
  // Predicated region
  $region14: #{allset_forward_pallas.10} parent=0 // pred_check
    _
  $region15: #{allset_forward_pallas.10} parent=0 // pred_check_branch
    %156 = sbr.rel (0) target = $region17
  $region16: #{allset_forward_pallas.10} parent=0 // pred_region
    _
  $region17: #{allset_forward_pallas.10} parent=0 // pred_fallthru
    _
  // Predicated region
  $region18: #{allset_forward_pallas.10} parent=0 // pred_check
    _
  $region19: #{allset_forward_pallas.10} parent=0 // pred_check_branch
    %158 = sbr.rel (0) target = $region21
  $region20: #{allset_forward_pallas.10} parent=0 // pred_region
    _
  $region21: #{allset_forward_pallas.10} parent=0 // pred_fallthru
    _

// kernel: allset_forward_pallas.11
$region0: #{allset_forward_pallas.11}
  #allocation0 [shape = 'u32[]', space=smem, size = 0x4, offset = 0x4, fixed_abs, tag = 'smem constant byte address 0x4 - core index']
  #allocation1 [shape = 'u32[144,128]{1,0:T(1,128)}', space=vmem, size = 0x12000, scoped, tag = 'internal scratch']
  #allocation2 [shape = 'f32[16,32]{1,0:T(8,128)}', space=vmem, size = 0x2000, scoped, tag = 'scratch operand']
  %s0 = inlined_call_operand.vmem [shape: bf16[16,16], index: 0, kind: input, shape index: {}]
  %s1 = inlined_call_operand.vmem [shape: bf16[16,32], index: 1, kind: input, shape index: {}]
  %s2 = inlined_call_operand.vmem [shape: bf16[32,32], index: 2, kind: input, shape index: {}]
  %s3 = inlined_call_operand.vmem [shape: bf16[32,32], index: 3, kind: input, shape index: {}]
  %s4 = inlined_call_operand.vmem [shape: f32[16,32], index: 4, kind: output, shape index: {}]
  %s5 = sld [smem:[#allocation0]]
  $region34: #{allset_forward_pallas.11} parent=0
    _
  %s7 = ssub.s32 1, %s5
  %s8 = scalar_select 0, %s7, %s5
  // Predicated region
  $region2: #{allset_forward_pallas.11} parent=0 // pred_check
    _
  $region3: #{allset_forward_pallas.11} parent=0 // pred_check_branch
    %10 = sbr.rel (0) target = $region5
  $region4: #{allset_forward_pallas.11} parent=0 // pred_region
    _
  $region5: #{allset_forward_pallas.11} parent=0 // pred_fallthru
    _
  // Predicated region
  $region6: #{allset_forward_pallas.11} parent=0 // pred_check
    _
  $region7: #{allset_forward_pallas.11} parent=0 // pred_check_branch
    %12 = sbr.rel (0) target = $region9
  $region8: #{allset_forward_pallas.11} parent=0 // pred_region
    _
  $region9: #{allset_forward_pallas.11} parent=0 // pred_fallthru
    _
  // Predicated region
  $region10: #{allset_forward_pallas.11} parent=0 // pred_check
    _
  $region11: #{allset_forward_pallas.11} parent=0 // pred_check_branch
    %14 = sbr.rel (0) target = $region13
  $region12: #{allset_forward_pallas.11} parent=0 // pred_region
    _
  $region13: #{allset_forward_pallas.11} parent=0 // pred_fallthru
    _
  // Predicated region
  $region14: #{allset_forward_pallas.11} parent=0 // pred_check
    _
  $region15: #{allset_forward_pallas.11} parent=0 // pred_check_branch
    %16 = sbr.rel (0) target = $region17
  $region16: #{allset_forward_pallas.11} parent=0 // pred_region
    _
  $region17: #{allset_forward_pallas.11} parent=0 // pred_fallthru
    _
  %p18 = scmp.eq.s32.totalorder 0, 0
  // Predicated region
  $region18: #{allset_forward_pallas.11} parent=0 // pred_check
    %p19 = pneg %p18
  $region19: #{allset_forward_pallas.11} parent=0 // pred_check_branch
    %21 = sbr.rel (%p19) target = $region21
  $region20: #{allset_forward_pallas.11} parent=0 // pred_region
    %vm22 = vcmask 261120
    %23 = vst.msk [vmem:[#allocation2] sm:$0xff] %vm22, 0.0
    %24 = vst.msk [vmem:[#allocation2 + $0x8] sm:$0xff] %vm22, 0.0
  $region21: #{allset_forward_pallas.11} parent=0 // pred_fallthru
    _
  %v25 = vld [vmem:[%s0] sm:$0xf]
  %v26 = vld [vmem:[%s0 + $0x4] sm:$0xf]
  %v27 = vld [vmem:[%s1] sm:$0xf]
  %v28 = vld [vmem:[%s1 + $0x4] sm:$0xf]
  %v31 = vunpack.c.l.b16 %v25
  %v32 = vunpack.c.l.b16 %v26
  %v33 = vpack.c.b16 %v32, %v31
  %v36 = vunpack.c.l.b16 %v27
  %v37 = vunpack.c.l.b16 %v28
  %v38 = vpack.c.b16 %v37, %v36
  %vm40 = vcmask 130048
  %v42 = vsel %vm40, %v33, 0
  %44 = vmatprep.subr.bf16.mxu0 0
  %45 = vmatpush1.bf16.msra.mxu0 %v38
  %46 = vmatprep.subr.bf16.mxu0 0
  %47 = vmatpush1.bf16.msra.mxu0 0
  %48 = vmatprep.subr.bf16.mxu0 0
  %49 = vmatpush1.bf16.msra.mxu0 0
  %50 = vmatprep.subr.bf16.mxu0 0
  %51 = vmatpush1.bf16.msra.mxu0 0
  %52 = vmatprep.subr.bf16.mxu0 0
  %53 = vmatpush1.bf16.msra.mxu0 0
  %54 = vmatprep.subr.bf16.mxu0 0
  %55 = vmatpush1.bf16.msra.mxu0 0
  %56 = vmatprep.subr.bf16.mxu0 0
  %57 = vmatpush1.bf16.msra.mxu0 0
  %58 = vmatprep.subr.bf16.mxu0 0
  %59 = vmatpush1.bf16.msra.mxu0 0
  %60 = vmatprep.subr.bf16.mxu0 0
  %61 = vmatpush1.bf16.msra.mxu0 0
  %62 = vmatprep.subr.bf16.mxu0 0
  %63 = vmatpush1.bf16.msra.mxu0 0
  %64 = vmatprep.subr.bf16.mxu0 0
  %65 = vmatpush1.bf16.msra.mxu0 0
  %66 = vmatprep.subr.bf16.mxu0 0
  %67 = vmatpush1.bf16.msra.mxu0 0
  %68 = vmatprep.subr.bf16.mxu0 0
  %69 = vmatpush1.bf16.msra.mxu0 0
  %70 = vmatprep.subr.bf16.mxu0 0
  %71 = vmatpush1.bf16.msra.mxu0 0
  %72 = vmatprep.subr.bf16.mxu0 0
  %73 = vmatpush1.bf16.msra.mxu0 0
  %74 = vmatprep.subr.bf16.mxu0 0
  %75 = vmatpush1.bf16.msra.mxu0 0
  %76 = vmatprep.mubr.bf16.mxu0 0
  %77 = vmatmul.mubr.bf16.gmra.mrb[0].mxu0 %v42
  %v78 = vpop.f32.mrb[0].mxu0
  %v79 = vadd.f32 0.0, %v78
  %v80 = vpop.f32.mrb[0].mxu0
  %v81 = vpop.f32.mrb[0].mxu0
  %v82 = vadd.f32 0.0, %v81
  %v83 = vpop.f32.mrb[0].mxu0
  %84 = vdwg.mxu0
  %v85 = vld [vmem:[#allocation2] sm:$0xff]
  %v86 = vld [vmem:[#allocation2 + $0x8] sm:$0xff]
  %v87 = vadd.f32 %v85, %v79
  %v88 = vadd.f32 %v86, %v82
  %vm89 = vcmask 261120
  %90 = vst.msk [vmem:[#allocation2] sm:$0xff] %vm89, %v87
  %91 = vst.msk [vmem:[#allocation2 + $0x8] sm:$0xff] %vm89, %v88
  // Predicated region
  $region22: #{allset_forward_pallas.11} parent=0 // pred_check
    %p92 = pneg %p18
  $region23: #{allset_forward_pallas.11} parent=0 // pred_check_branch
    %94 = sbr.rel (%p92) target = $region25
  $region24: #{allset_forward_pallas.11} parent=0 // pred_region
    %v95 = vld [vmem:[#allocation2] sm:$0xff]
    %v96 = vld [vmem:[#allocation2 + $0x8] sm:$0xff]
    %v97 = vpack.c.bf16 %v96, %v95
    %v98 = vld [vmem:[%s2] sm:$0xf]
    %v99 = vld [vmem:[%s2 + $0x4] sm:$0xf]
    %v100 = vld [vmem:[%s2 + $0x8] sm:$0xf]
    %v101 = vld [vmem:[%s2 + $0xc] sm:$0xf]
    %v106 = vunpack.c.l.b16 %v98
    %v107 = vunpack.c.l.b16 %v99
    %v108 = vunpack.c.l.b16 %v100
    %v109 = vunpack.c.l.b16 %v101
    %v110 = vpack.c.b16 %v107, %v106
    %v111 = vpack.c.b16 %v109, %v108
    %v115 = vsel %vm89, %v97, 0
    %117 = vmatprep.subr.bf16.mxu0 0
    %118 = vmatpush1.bf16.msra.mxu0 %v110
    %119 = vmatprep.subr.bf16.mxu0 0
    %120 = vmatpush1.bf16.msra.mxu0 %v111
    %121 = vmatprep.subr.bf16.mxu0 0
    %122 = vmatpush1.bf16.msra.mxu0 0
    %123 = vmatprep.subr.bf16.mxu0 0
    %124 = vmatpush1.bf16.msra.mxu0 0
    %125 = vmatprep.subr.bf16.mxu0 0
    %126 = vmatpush1.bf16.msra.mxu0 0
    %127 = vmatprep.subr.bf16.mxu0 0
    %128 = vmatpush1.bf16.msra.mxu0 0
    %129 = vmatprep.subr.bf16.mxu0 0
    %130 = vmatpush1.bf16.msra.mxu0 0
    %131 = vmatprep.subr.bf16.mxu0 0
    %132 = vmatpush1.bf16.msra.mxu0 0
    %133 = vmatprep.subr.bf16.mxu0 0
    %134 = vmatpush1.bf16.msra.mxu0 0
    %135 = vmatprep.subr.bf16.mxu0 0
    %136 = vmatpush1.bf16.msra.mxu0 0
    %137 = vmatprep.subr.bf16.mxu0 0
    %138 = vmatpush1.bf16.msra.mxu0 0
    %139 = vmatprep.subr.bf16.mxu0 0
    %140 = vmatpush1.bf16.msra.mxu0 0
    %141 = vmatprep.subr.bf16.mxu0 0
    %142 = vmatpush1.bf16.msra.mxu0 0
    %143 = vmatprep.subr.bf16.mxu0 0
    %144 = vmatpush1.bf16.msra.mxu0 0
    %145 = vmatprep.subr.bf16.mxu0 0
    %146 = vmatpush1.bf16.msra.mxu0 0
    %147 = vmatprep.subr.bf16.mxu0 0
    %148 = vmatpush1.bf16.msra.mxu0 0
    %149 = vmatprep.mubr.bf16.mxu0 0
    %150 = vmatmul.mubr.bf16.gmra.mrb[0].mxu0 %v115
    %v151 = vpop.f32.mrb[0].mxu0
    %v152 = vadd.f32 0.0, %v151
    %v153 = vpop.f32.mrb[0].mxu0
    %v154 = vpop.f32.mrb[0].mxu0
    %v155 = vadd.f32 0.0, %v154
    %v156 = vpop.f32.mrb[0].mxu0
    %157 = vdwg.mxu0
    %v158 = vmax.f32 %v152, 0.0
    %v159 = vmax.f32 %v155, 0.0
    %v160 = vpack.c.bf16 %v159, %v158
    %v161 = vld [vmem:[%s3] sm:$0xf]
    %v162 = vld [vmem:[%s3 + $0x4] sm:$0xf]
    %v163 = vld [vmem:[%s3 + $0x8] sm:$0xf]
    %v164 = vld [vmem:[%s3 + $0xc] sm:$0xf]
    %v169 = vunpack.c.l.b16 %v161
    %v170 = vunpack.c.l.b16 %v162
    %v171 = vunpack.c.l.b16 %v163
    %v172 = vunpack.c.l.b16 %v164
    %v173 = vpack.c.b16 %v170, %v169
    %v174 = vpack.c.b16 %v172, %v171
    %v178 = vsel %vm89, %v160, 0
    %180 = vmatprep.subr.bf16.mxu0 0
    %181 = vmatpush1.bf16.msra.mxu0 %v173
    %182 = vmatprep.subr.bf16.mxu0 0
    %183 = vmatpush1.bf16.msra.mxu0 %v174
    %184 = vmatprep.subr.bf16.mxu0 0
    %185 = vmatpush1.bf16.msra.mxu0 0
    %186 = vmatprep.subr.bf16.mxu0 0
    %187 = vmatpush1.bf16.msra.mxu0 0
    %188 = vmatprep.subr.bf16.mxu0 0
    %189 = vmatpush1.bf16.msra.mxu0 0
    %190 = vmatprep.subr.bf16.mxu0 0
    %191 = vmatpush1.bf16.msra.mxu0 0
    %192 = vmatprep.subr.bf16.mxu0 0
    %193 = vmatpush1.bf16.msra.mxu0 0
    %194 = vmatprep.subr.bf16.mxu0 0
    %195 = vmatpush1.bf16.msra.mxu0 0
    %196 = vmatprep.subr.bf16.mxu0 0
    %197 = vmatpush1.bf16.msra.mxu0 0
    %198 = vmatprep.subr.bf16.mxu0 0
    %199 = vmatpush1.bf16.msra.mxu0 0
    %200 = vmatprep.subr.bf16.mxu0 0
    %201 = vmatpush1.bf16.msra.mxu0 0
    %202 = vmatprep.subr.bf16.mxu0 0
    %203 = vmatpush1.bf16.msra.mxu0 0
    %204 = vmatprep.subr.bf16.mxu0 0
    %205 = vmatpush1.bf16.msra.mxu0 0
    %206 = vmatprep.subr.bf16.mxu0 0
    %207 = vmatpush1.bf16.msra.mxu0 0
    %208 = vmatprep.subr.bf16.mxu0 0
    %209 = vmatpush1.bf16.msra.mxu0 0
    %210 = vmatprep.subr.bf16.mxu0 0
    %211 = vmatpush1.bf16.msra.mxu0 0
    %212 = vmatprep.mubr.bf16.mxu0 0
    %213 = vmatmul.mubr.bf16.gmra.mrb[0].mxu0 %v178
    %v214 = vpop.f32.mrb[0].mxu0
    %v215 = vadd.f32 0.0, %v214
    %v216 = vpop.f32.mrb[0].mxu0
    %v217 = vpop.f32.mrb[0].mxu0
    %v218 = vadd.f32 0.0, %v217
    %v219 = vpop.f32.mrb[0].mxu0
    %220 = vdwg.mxu0
    %v221 = vmax.f32 %v215, 0.0
    %v222 = vmax.f32 %v218, 0.0
    %223 = vst.msk [vmem:[%s4] sm:$0xff] %vm89, %v221
    %224 = vst.msk [vmem:[%s4 + $0x8] sm:$0xff] %vm89, %v222
  $region25: #{allset_forward_pallas.11} parent=0 // pred_fallthru
    _
  // Predicated region
  $region26: #{allset_forward_pallas.11} parent=0 // pred_check
    _
  $region27: #{allset_forward_pallas.11} parent=0 // pred_check_branch
    %226 = sbr.rel (0) target = $region29
  $region28: #{allset_forward_pallas.11} parent=0 // pred_region
    _
  $region29: #{allset_forward_pallas.11} parent=0 // pred_fallthru
    _
  // Predicated region
  $region30: #{allset_forward_pallas.11} parent=0 // pred_check
    _
  $region31: #{allset_forward_pallas.11} parent=0 // pred_check_branch
    %228 = sbr.rel (0) target = $region33
  $region32: #{allset_forward_pallas.11} parent=0 // pred_region
    _
  $region33: #{allset_forward_pallas.11} parent=0 // pred_fallthru
    _

// kernel: allset_forward_pallas.9
$region0: #{allset_forward_pallas.9}
  #allocation0 [shape = 'u32[]', space=smem, size = 0x4, offset = 0x4, fixed_abs, tag = 'smem constant byte address 0x4 - core index']
  #allocation1 [shape = 'u32[144,128]{1,0:T(1,128)}', space=vmem, size = 0x12000, scoped, tag = 'internal scratch']
  #allocation2 [shape = 'f32[16,32]{1,0:T(8,128)}', space=vmem, size = 0x2000, scoped, tag = 'scratch operand']
  %s0 = inlined_call_operand.vmem [shape: bf16[16,16], index: 0, kind: input, shape index: {}]
  %s1 = inlined_call_operand.vmem [shape: bf16[16,32], index: 1, kind: input, shape index: {}]
  %s2 = inlined_call_operand.vmem [shape: bf16[32,32], index: 2, kind: input, shape index: {}]
  %s3 = inlined_call_operand.vmem [shape: bf16[32,32], index: 3, kind: input, shape index: {}]
  %s4 = inlined_call_operand.vmem [shape: f32[16,32], index: 4, kind: output, shape index: {}]
  %s5 = sld [smem:[#allocation0]]
  $region34: #{allset_forward_pallas.9} parent=0
    _
  %s7 = ssub.s32 1, %s5
  %s8 = scalar_select 0, %s7, %s5
  // Predicated region
  $region2: #{allset_forward_pallas.9} parent=0 // pred_check
    _
  $region3: #{allset_forward_pallas.9} parent=0 // pred_check_branch
    %10 = sbr.rel (0) target = $region5
  $region4: #{allset_forward_pallas.9} parent=0 // pred_region
    _
  $region5: #{allset_forward_pallas.9} parent=0 // pred_fallthru
    _
  // Predicated region
  $region6: #{allset_forward_pallas.9} parent=0 // pred_check
    _
  $region7: #{allset_forward_pallas.9} parent=0 // pred_check_branch
    %12 = sbr.rel (0) target = $region9
  $region8: #{allset_forward_pallas.9} parent=0 // pred_region
    _
  $region9: #{allset_forward_pallas.9} parent=0 // pred_fallthru
    _
  // Predicated region
  $region10: #{allset_forward_pallas.9} parent=0 // pred_check
    _
  $region11: #{allset_forward_pallas.9} parent=0 // pred_check_branch
    %14 = sbr.rel (0) target = $region13
  $region12: #{allset_forward_pallas.9} parent=0 // pred_region
    _
  $region13: #{allset_forward_pallas.9} parent=0 // pred_fallthru
    _
  // Predicated region
  $region14: #{allset_forward_pallas.9} parent=0 // pred_check
    _
  $region15: #{allset_forward_pallas.9} parent=0 // pred_check_branch
    %16 = sbr.rel (0) target = $region17
  $region16: #{allset_forward_pallas.9} parent=0 // pred_region
    _
  $region17: #{allset_forward_pallas.9} parent=0 // pred_fallthru
    _
  %p18 = scmp.eq.s32.totalorder 0, 0
  // Predicated region
  $region18: #{allset_forward_pallas.9} parent=0 // pred_check
    %p19 = pneg %p18
  $region19: #{allset_forward_pallas.9} parent=0 // pred_check_branch
    %21 = sbr.rel (%p19) target = $region21
  $region20: #{allset_forward_pallas.9} parent=0 // pred_region
    %vm22 = vcmask 261120
    %23 = vst.msk [vmem:[#allocation2] sm:$0xff] %vm22, 0.0
    %24 = vst.msk [vmem:[#allocation2 + $0x8] sm:$0xff] %vm22, 0.0
  $region21: #{allset_forward_pallas.9} parent=0 // pred_fallthru
    _
  %v25 = vld [vmem:[%s0] sm:$0xf]
  %v26 = vld [vmem:[%s0 + $0x4] sm:$0xf]
  %v27 = vld [vmem:[%s1] sm:$0xf]
  %v28 = vld [vmem:[%s1 + $0x4] sm:$0xf]
  %v31 = vunpack.c.l.b16 %v25
  %v32 = vunpack.c.l.b16 %v26
  %v33 = vpack.c.b16 %v32, %v31
  %35 = vxpose.xlu0.c.b16.start [1/8] %v33, 128
  %36 = vxpose.xlu0.c.b16.cont [2/8] 0, 128
  %37 = vxpose.xlu0.c.b16.cont [3/8] 0, 128
  %38 = vxpose.xlu0.c.b16.cont [4/8] 0, 128
  %39 = vxpose.xlu0.c.b16.cont [5/8] 0, 128
  %40 = vxpose.xlu0.c.b16.cont [6/8] 0, 128
  %41 = vxpose.xlu0.c.b16.cont [7/8] 0, 128
  %42 = vxpose.xlu0.c.b16.end [8/8] 0, 128
  %v43 = vpop.trf.xlu0
  %v44 = vpop.trf.xlu0
  %v45 = vpop.trf.xlu0
  %v46 = vpop.trf.xlu0
  %v47 = vpop.trf.xlu0
  %v48 = vpop.trf.xlu0
  %v49 = vpop.trf.xlu0
  %v50 = vpop.trf.xlu0
  %v53 = vunpack.c.l.b16 %v27
  %v54 = vunpack.c.l.b16 %v28
  %v55 = vpack.c.b16 %v54, %v53
  %vm57 = vcmask 130048
  %v59 = vsel %vm57, %v43, 0
  %61 = vmatprep.subr.bf16.mxu0 0
  %62 = vmatpush1.bf16.msra.mxu0 %v55
  %63 = vmatprep.subr.bf16.mxu0 0
  %64 = vmatpush1.bf16.msra.mxu0 0
  %65 = vmatprep.subr.bf16.mxu0 0
  %66 = vmatpush1.bf16.msra.mxu0 0
  %67 = vmatprep.subr.bf16.mxu0 0
  %68 = vmatpush1.bf16.msra.mxu0 0
  %69 = vmatprep.subr.bf16.mxu0 0
  %70 = vmatpush1.bf16.msra.mxu0 0
  %71 = vmatprep.subr.bf16.mxu0 0
  %72 = vmatpush1.bf16.msra.mxu0 0
  %73 = vmatprep.subr.bf16.mxu0 0
  %74 = vmatpush1.bf16.msra.mxu0 0
  %75 = vmatprep.subr.bf16.mxu0 0
  %76 = vmatpush1.bf16.msra.mxu0 0
  %77 = vmatprep.subr.bf16.mxu0 0
  %78 = vmatpush1.bf16.msra.mxu0 0
  %79 = vmatprep.subr.bf16.mxu0 0
  %80 = vmatpush1.bf16.msra.mxu0 0
  %81 = vmatprep.subr.bf16.mxu0 0
  %82 = vmatpush1.bf16.msra.mxu0 0
  %83 = vmatprep.subr.bf16.mxu0 0
  %84 = vmatpush1.bf16.msra.mxu0 0
  %85 = vmatprep.subr.bf16.mxu0 0
  %86 = vmatpush1.bf16.msra.mxu0 0
  %87 = vmatprep.subr.bf16.mxu0 0
  %88 = vmatpush1.bf16.msra.mxu0 0
  %89 = vmatprep.subr.bf16.mxu0 0
  %90 = vmatpush1.bf16.msra.mxu0 0
  %91 = vmatprep.subr.bf16.mxu0 0
  %92 = vmatpush1.bf16.msra.mxu0 0
  %93 = vmatprep.mubr.bf16.mxu0 0
  %94 = vmatmul.mubr.bf16.gmra.mrb[0].mxu0 %v59
  %v95 = vpop.f32.mrb[0].mxu0
  %v96 = vadd.f32 0.0, %v95
  %v97 = vpop.f32.mrb[0].mxu0
  %v98 = vpop.f32.mrb[0].mxu0
  %v99 = vadd.f32 0.0, %v98
  %v100 = vpop.f32.mrb[0].mxu0
  %101 = vdwg.mxu0
  %v102 = vld [vmem:[#allocation2] sm:$0xff]
  %v103 = vld [vmem:[#allocation2 + $0x8] sm:$0xff]
  %v104 = vadd.f32 %v102, %v96
  %v105 = vadd.f32 %v103, %v99
  %vm106 = vcmask 261120
  %107 = vst.msk [vmem:[#allocation2] sm:$0xff] %vm106, %v104
  %108 = vst.msk [vmem:[#allocation2 + $0x8] sm:$0xff] %vm106, %v105
  // Predicated region
  $region22: #{allset_forward_pallas.9} parent=0 // pred_check
    %p109 = pneg %p18
  $region23: #{allset_forward_pallas.9} parent=0 // pred_check_branch
    %111 = sbr.rel (%p109) target = $region25
  $region24: #{allset_forward_pallas.9} parent=0 // pred_region
    %v112 = vld [vmem:[#allocation2] sm:$0xff]
    %v113 = vld [vmem:[#allocation2 + $0x8] sm:$0xff]
    %v114 = vpack.c.bf16 %v113, %v112
    %v115 = vld [vmem:[%s2] sm:$0xf]
    %v116 = vld [vmem:[%s2 + $0x4] sm:$0xf]
    %v117 = vld [vmem:[%s2 + $0x8] sm:$0xf]
    %v118 = vld [vmem:[%s2 + $0xc] sm:$0xf]
    %v123 = vunpack.c.l.b16 %v115
    %v124 = vunpack.c.l.b16 %v116
    %v125 = vunpack.c.l.b16 %v117
    %v126 = vunpack.c.l.b16 %v118
    %v127 = vpack.c.b16 %v124, %v123
    %v128 = vpack.c.b16 %v126, %v125
    %v132 = vsel %vm106, %v114, 0
    %134 = vmatprep.subr.bf16.mxu0 0
    %135 = vmatpush1.bf16.msra.mxu0 %v127
    %136 = vmatprep.subr.bf16.mxu0 0
    %137 = vmatpush1.bf16.msra.mxu0 %v128
    %138 = vmatprep.subr.bf16.mxu0 0
    %139 = vmatpush1.bf16.msra.mxu0 0
    %140 = vmatprep.subr.bf16.mxu0 0
    %141 = vmatpush1.bf16.msra.mxu0 0
    %142 = vmatprep.subr.bf16.mxu0 0
    %143 = vmatpush1.bf16.msra.mxu0 0
    %144 = vmatprep.subr.bf16.mxu0 0
    %145 = vmatpush1.bf16.msra.mxu0 0
    %146 = vmatprep.subr.bf16.mxu0 0
    %147 = vmatpush1.bf16.msra.mxu0 0
    %148 = vmatprep.subr.bf16.mxu0 0
    %149 = vmatpush1.bf16.msra.mxu0 0
    %150 = vmatprep.subr.bf16.mxu0 0
    %151 = vmatpush1.bf16.msra.mxu0 0
    %152 = vmatprep.subr.bf16.mxu0 0
    %153 = vmatpush1.bf16.msra.mxu0 0
    %154 = vmatprep.subr.bf16.mxu0 0
    %155 = vmatpush1.bf16.msra.mxu0 0
    %156 = vmatprep.subr.bf16.mxu0 0
    %157 = vmatpush1.bf16.msra.mxu0 0
    %158 = vmatprep.subr.bf16.mxu0 0
    %159 = vmatpush1.bf16.msra.mxu0 0
    %160 = vmatprep.subr.bf16.mxu0 0
    %161 = vmatpush1.bf16.msra.mxu0 0
    %162 = vmatprep.subr.bf16.mxu0 0
    %163 = vmatpush1.bf16.msra.mxu0 0
    %164 = vmatprep.subr.bf16.mxu0 0
    %165 = vmatpush1.bf16.msra.mxu0 0
    %166 = vmatprep.mubr.bf16.mxu0 0
    %167 = vmatmul.mubr.bf16.gmra.mrb[0].mxu0 %v132
    %v168 = vpop.f32.mrb[0].mxu0
    %v169 = vadd.f32 0.0, %v168
    %v170 = vpop.f32.mrb[0].mxu0
    %v171 = vpop.f32.mrb[0].mxu0
    %v172 = vadd.f32 0.0, %v171
    %v173 = vpop.f32.mrb[0].mxu0
    %174 = vdwg.mxu0
    %v175 = vmax.f32 %v169, 0.0
    %v176 = vmax.f32 %v172, 0.0
    %v177 = vpack.c.bf16 %v176, %v175
    %v178 = vld [vmem:[%s3] sm:$0xf]
    %v179 = vld [vmem:[%s3 + $0x4] sm:$0xf]
    %v180 = vld [vmem:[%s3 + $0x8] sm:$0xf]
    %v181 = vld [vmem:[%s3 + $0xc] sm:$0xf]
    %v186 = vunpack.c.l.b16 %v178
    %v187 = vunpack.c.l.b16 %v179
    %v188 = vunpack.c.l.b16 %v180
    %v189 = vunpack.c.l.b16 %v181
    %v190 = vpack.c.b16 %v187, %v186
    %v191 = vpack.c.b16 %v189, %v188
    %v195 = vsel %vm106, %v177, 0
    %197 = vmatprep.subr.bf16.mxu0 0
    %198 = vmatpush1.bf16.msra.mxu0 %v190
    %199 = vmatprep.subr.bf16.mxu0 0
    %200 = vmatpush1.bf16.msra.mxu0 %v191
    %201 = vmatprep.subr.bf16.mxu0 0
    %202 = vmatpush1.bf16.msra.mxu0 0
    %203 = vmatprep.subr.bf16.mxu0 0
    %204 = vmatpush1.bf16.msra.mxu0 0
    %205 = vmatprep.subr.bf16.mxu0 0
    %206 = vmatpush1.bf16.msra.mxu0 0
    %207 = vmatprep.subr.bf16.mxu0 0
    %208 = vmatpush1.bf16.msra.mxu0 0
    %209 = vmatprep.subr.bf16.mxu0 0
    %210 = vmatpush1.bf16.msra.mxu0 0
    %211 = vmatprep.subr.bf16.mxu0 0
    %212 = vmatpush1.bf16.msra.mxu0 0
    %213 = vmatprep.subr.bf16.mxu0 0
    %214 = vmatpush1.bf16.msra.mxu0 0
    %215 = vmatprep.subr.bf16.mxu0 0
    %216 = vmatpush1.bf16.msra.mxu0 0
    %217 = vmatprep.subr.bf16.mxu0 0
    %218 = vmatpush1.bf16.msra.mxu0 0
    %219 = vmatprep.subr.bf16.mxu0 0
    %220 = vmatpush1.bf16.msra.mxu0 0
    %221 = vmatprep.subr.bf16.mxu0 0
    %222 = vmatpush1.bf16.msra.mxu0 0
    %223 = vmatprep.subr.bf16.mxu0 0
    %224 = vmatpush1.bf16.msra.mxu0 0
    %225 = vmatprep.subr.bf16.mxu0 0
    %226 = vmatpush1.bf16.msra.mxu0 0
    %227 = vmatprep.subr.bf16.mxu0 0
    %228 = vmatpush1.bf16.msra.mxu0 0
    %229 = vmatprep.mubr.bf16.mxu0 0
    %230 = vmatmul.mubr.bf16.gmra.mrb[0].mxu0 %v195
    %v231 = vpop.f32.mrb[0].mxu0
    %v232 = vadd.f32 0.0, %v231
    %v233 = vpop.f32.mrb[0].mxu0
    %v234 = vpop.f32.mrb[0].mxu0
    %v235 = vadd.f32 0.0, %v234
    %v236 = vpop.f32.mrb[0].mxu0
    %237 = vdwg.mxu0
    %v238 = vmax.f32 %v232, 0.0
    %v239 = vmax.f32 %v235, 0.0
    %240 = vst.msk [vmem:[%s4] sm:$0xff] %vm106, %v238
    %241 = vst.msk [vmem:[%s4 + $0x8] sm:$0xff] %vm106, %v239
  $region25: #{allset_forward_pallas.9} parent=0 // pred_fallthru
    _
  // Predicated region
  $region26: #{allset_forward_pallas.9} parent=0 // pred_check
    _
  $region27: #{allset_forward_pallas.9} parent=0 // pred_check_branch
    %243 = sbr.rel (0) target = $region29
  $region28: #{allset_forward_pallas.9} parent=0 // pred_region
    _
  $region29: #{allset_forward_pallas.9} parent=0 // pred_fallthru
    _
  // Predicated region
  $region30: #{allset_forward_pallas.9} parent=0 // pred_check
    _
  $region31: #{allset_forward_pallas.9} parent=0 // pred_check_branch
    %245 = sbr.rel (0) target = $region33
  $region32: #{allset_forward_pallas.9} parent=0 // pred_region
    _
  $region33: #{allset_forward_pallas.9} parent=0 // pred_fallthru
    _

// kernel: allset_forward_pallas.15
$region0: #{allset_forward_pallas.15}
  #allocation0 [shape = 'u32[]', space=smem, size = 0x4, offset = 0x4, fixed_abs, tag = 'smem constant byte address 0x4 - core index']
  #allocation1 [shape = 'u32[144,128]{1,0:T(1,128)}', space=vmem, size = 0x12000, scoped, tag = 'internal scratch']
  #allocation2 [shape = 'f32[16,32]{1,0:T(8,128)}', space=vmem, size = 0x2000, scoped, tag = 'scratch operand']
  %s0 = inlined_call_operand.vmem [shape: bf16[16,16], index: 0, kind: input, shape index: {}]
  %s1 = inlined_call_operand.vmem [shape: bf16[16,32], index: 1, kind: input, shape index: {}]
  %s2 = inlined_call_operand.vmem [shape: bf16[32,32], index: 2, kind: input, shape index: {}]
  %s3 = inlined_call_operand.vmem [shape: bf16[32,32], index: 3, kind: input, shape index: {}]
  %s4 = inlined_call_operand.hbm [shape: f32[16,32], index: 4, kind: output, shape index: {}]
  %s5 = sld [smem:[#allocation0]]
  $region34: #{allset_forward_pallas.15} parent=0
    _
  %s7 = ssub.s32 1, %s5
  %s8 = scalar_select 0, %s7, %s5
  $region1: #{allset_forward_pallas.15} parent=0
    #allocation3 [shape = 'u8[8192]{0}', space=vmem, size = 0x2000, scoped, tag = 'output window, operand 0, single buffered']
    #allocation4 [shape = 's32[1]{0}', space=sflag, size = 0x4, scoped, tag = 'scoped memory for allset_forward_pallas.15']
    %9 = vsyncpa [#allocation4], 0
    // Predicated region
    $region2: #{allset_forward_pallas.15} parent=1 // pred_check
      _
    $region3: #{allset_forward_pallas.15} parent=1 // pred_check_branch
      %11 = sbr.rel (0) target = $region5
    $region4: #{allset_forward_pallas.15} parent=1 // pred_region
      _
    $region5: #{allset_forward_pallas.15} parent=1 // pred_fallthru
      _
    // Predicated region
    $region6: #{allset_forward_pallas.15} parent=1 // pred_check
      _
    $region7: #{allset_forward_pallas.15} parent=1 // pred_check_branch
      %13 = sbr.rel (0) target = $region9
    $region8: #{allset_forward_pallas.15} parent=1 // pred_region
      _
    $region9: #{allset_forward_pallas.15} parent=1 // pred_fallthru
      _
    // Predicated region
    $region10: #{allset_forward_pallas.15} parent=1 // pred_check
      _
    $region11: #{allset_forward_pallas.15} parent=1 // pred_check_branch
      %15 = sbr.rel (0) target = $region13
    $region12: #{allset_forward_pallas.15} parent=1 // pred_region
      _
    $region13: #{allset_forward_pallas.15} parent=1 // pred_fallthru
      _
    // Predicated region
    $region14: #{allset_forward_pallas.15} parent=1 // pred_check
      _
    $region15: #{allset_forward_pallas.15} parent=1 // pred_check_branch
      %17 = sbr.rel (0) target = $region17
    $region16: #{allset_forward_pallas.15} parent=1 // pred_region
      _
    $region17: #{allset_forward_pallas.15} parent=1 // pred_fallthru
      _
    %p19 = scmp.eq.s32.totalorder 0, 0
    // Predicated region
    $region18: #{allset_forward_pallas.15} parent=1 // pred_check
      %p20 = pneg %p19
    $region19: #{allset_forward_pallas.15} parent=1 // pred_check_branch
      %22 = sbr.rel (%p20) target = $region21
    $region20: #{allset_forward_pallas.15} parent=1 // pred_region
      %vm23 = vcmask 261120
      %24 = vst.msk [vmem:[#allocation2] sm:$0xff] %vm23, 0.0
      %25 = vst.msk [vmem:[#allocation2 + $0x8] sm:$0xff] %vm23, 0.0
    $region21: #{allset_forward_pallas.15} parent=1 // pred_fallthru
      _
    %v26 = vld [vmem:[%s0] sm:$0xf]
    %v27 = vld [vmem:[%s0 + $0x4] sm:$0xf]
    %v28 = vld [vmem:[%s1] sm:$0xf]
    %v29 = vld [vmem:[%s1 + $0x4] sm:$0xf]
    %v32 = vunpack.c.l.b16 %v26
    %v33 = vunpack.c.l.b16 %v27
    %v34 = vpack.c.b16 %v33, %v32
    %v37 = vunpack.c.l.b16 %v28
    %v38 = vunpack.c.l.b16 %v29
    %v39 = vpack.c.b16 %v38, %v37
    %vm41 = vcmask 130048
    %v43 = vsel %vm41, %v34, 0
    %45 = vmatprep.subr.bf16.mxu0 0
    %46 = vmatpush1.bf16.msra.mxu0 %v39
    %47 = vmatprep.subr.bf16.mxu0 0
    %48 = vmatpush1.bf16.msra.mxu0 0
    %49 = vmatprep.subr.bf16.mxu0 0
    %50 = vmatpush1.bf16.msra.mxu0 0
    %51 = vmatprep.subr.bf16.mxu0 0
    %52 = vmatpush1.bf16.msra.mxu0 0
    %53 = vmatprep.subr.bf16.mxu0 0
    %54 = vmatpush1.bf16.msra.mxu0 0
    %55 = vmatprep.subr.bf16.mxu0 0
    %56 = vmatpush1.bf16.msra.mxu0 0
    %57 = vmatprep.subr.bf16.mxu0 0
    %58 = vmatpush1.bf16.msra.mxu0 0
    %59 = vmatprep.subr.bf16.mxu0 0
    %60 = vmatpush1.bf16.msra.mxu0 0
    %61 = vmatprep.subr.bf16.mxu0 0
    %62 = vmatpush1.bf16.msra.mxu0 0
    %63 = vmatprep.subr.bf16.mxu0 0
    %64 = vmatpush1.bf16.msra.mxu0 0
    %65 = vmatprep.subr.bf16.mxu0 0
    %66 = vmatpush1.bf16.msra.mxu0 0
    %67 = vmatprep.subr.bf16.mxu0 0
    %68 = vmatpush1.bf16.msra.mxu0 0
    %69 = vmatprep.subr.bf16.mxu0 0
    %70 = vmatpush1.bf16.msra.mxu0 0
    %71 = vmatprep.subr.bf16.mxu0 0
    %72 = vmatpush1.bf16.msra.mxu0 0
    %73 = vmatprep.subr.bf16.mxu0 0
    %74 = vmatpush1.bf16.msra.mxu0 0
    %75 = vmatprep.subr.bf16.mxu0 0
    %76 = vmatpush1.bf16.msra.mxu0 0
    %77 = vmatprep.mubr.bf16.mxu0 0
    %78 = vmatmul.mubr.bf16.gmra.mrb[0].mxu0 %v43
    %v79 = vpop.f32.mrb[0].mxu0
    %v80 = vadd.f32 0.0, %v79
    %v81 = vpop.f32.mrb[0].mxu0
    %v82 = vpop.f32.mrb[0].mxu0
    %v83 = vadd.f32 0.0, %v82
    %v84 = vpop.f32.mrb[0].mxu0
    %85 = vdwg.mxu0
    %v86 = vld [vmem:[#allocation2] sm:$0xff]
    %v87 = vld [vmem:[#allocation2 + $0x8] sm:$0xff]
    %v88 = vadd.f32 %v86, %v80
    %v89 = vadd.f32 %v87, %v83
    %vm90 = vcmask 261120
    %91 = vst.msk [vmem:[#allocation2] sm:$0xff] %vm90, %v88
    %92 = vst.msk [vmem:[#allocation2 + $0x8] sm:$0xff] %vm90, %v89
    // Predicated region
    $region22: #{allset_forward_pallas.15} parent=1 // pred_check
      %p93 = pneg %p19
    $region23: #{allset_forward_pallas.15} parent=1 // pred_check_branch
      %95 = sbr.rel (%p93) target = $region25
    $region24: #{allset_forward_pallas.15} parent=1 // pred_region
      %v96 = vld [vmem:[#allocation2] sm:$0xff]
      %v97 = vld [vmem:[#allocation2 + $0x8] sm:$0xff]
      %v98 = vpack.c.bf16 %v97, %v96
      %v99 = vld [vmem:[%s2] sm:$0xf]
      %v100 = vld [vmem:[%s2 + $0x4] sm:$0xf]
      %v101 = vld [vmem:[%s2 + $0x8] sm:$0xf]
      %v102 = vld [vmem:[%s2 + $0xc] sm:$0xf]
      %v107 = vunpack.c.l.b16 %v99
      %v108 = vunpack.c.l.b16 %v100
      %v109 = vunpack.c.l.b16 %v101
      %v110 = vunpack.c.l.b16 %v102
      %v111 = vpack.c.b16 %v108, %v107
      %v112 = vpack.c.b16 %v110, %v109
      %v116 = vsel %vm90, %v98, 0
      %118 = vmatprep.subr.bf16.mxu0 0
      %119 = vmatpush1.bf16.msra.mxu0 %v111
      %120 = vmatprep.subr.bf16.mxu0 0
      %121 = vmatpush1.bf16.msra.mxu0 %v112
      %122 = vmatprep.subr.bf16.mxu0 0
      %123 = vmatpush1.bf16.msra.mxu0 0
      %124 = vmatprep.subr.bf16.mxu0 0
      %125 = vmatpush1.bf16.msra.mxu0 0
      %126 = vmatprep.subr.bf16.mxu0 0
      %127 = vmatpush1.bf16.msra.mxu0 0
      %128 = vmatprep.subr.bf16.mxu0 0
      %129 = vmatpush1.bf16.msra.mxu0 0
      %130 = vmatprep.subr.bf16.mxu0 0
      %131 = vmatpush1.bf16.msra.mxu0 0
      %132 = vmatprep.subr.bf16.mxu0 0
      %133 = vmatpush1.bf16.msra.mxu0 0
      %134 = vmatprep.subr.bf16.mxu0 0
      %135 = vmatpush1.bf16.msra.mxu0 0
      %136 = vmatprep.subr.bf16.mxu0 0
      %137 = vmatpush1.bf16.msra.mxu0 0
      %138 = vmatprep.subr.bf16.mxu0 0
      %139 = vmatpush1.bf16.msra.mxu0 0
      %140 = vmatprep.subr.bf16.mxu0 0
      %141 = vmatpush1.bf16.msra.mxu0 0
      %142 = vmatprep.subr.bf16.mxu0 0
      %143 = vmatpush1.bf16.msra.mxu0 0
      %144 = vmatprep.subr.bf16.mxu0 0
      %145 = vmatpush1.bf16.msra.mxu0 0
      %146 = vmatprep.subr.bf16.mxu0 0
      %147 = vmatpush1.bf16.msra.mxu0 0
      %148 = vmatprep.subr.bf16.mxu0 0
      %149 = vmatpush1.bf16.msra.mxu0 0
      %150 = vmatprep.mubr.bf16.mxu0 0
      %151 = vmatmul.mubr.bf16.gmra.mrb[0].mxu0 %v116
      %v152 = vpop.f32.mrb[0].mxu0
      %v153 = vadd.f32 0.0, %v152
      %v154 = vpop.f32.mrb[0].mxu0
      %v155 = vpop.f32.mrb[0].mxu0
      %v156 = vadd.f32 0.0, %v155
      %v157 = vpop.f32.mrb[0].mxu0
      %158 = vdwg.mxu0
      %v159 = vmax.f32 %v153, 0.0
      %v160 = vmax.f32 %v156, 0.0
      %v161 = vpack.c.bf16 %v160, %v159
      %v162 = vld [vmem:[%s3] sm:$0xf]
      %v163 = vld [vmem:[%s3 + $0x4] sm:$0xf]
      %v164 = vld [vmem:[%s3 + $0x8] sm:$0xf]
      %v165 = vld [vmem:[%s3 + $0xc] sm:$0xf]
      %v170 = vunpack.c.l.b16 %v162
      %v171 = vunpack.c.l.b16 %v163
      %v172 = vunpack.c.l.b16 %v164
      %v173 = vunpack.c.l.b16 %v165
      %v174 = vpack.c.b16 %v171, %v170
      %v175 = vpack.c.b16 %v173, %v172
      %v179 = vsel %vm90, %v161, 0
      %181 = vmatprep.subr.bf16.mxu0 0
      %182 = vmatpush1.bf16.msra.mxu0 %v174
      %183 = vmatprep.subr.bf16.mxu0 0
      %184 = vmatpush1.bf16.msra.mxu0 %v175
      %185 = vmatprep.subr.bf16.mxu0 0
      %186 = vmatpush1.bf16.msra.mxu0 0
      %187 = vmatprep.subr.bf16.mxu0 0
      %188 = vmatpush1.bf16.msra.mxu0 0
      %189 = vmatprep.subr.bf16.mxu0 0
      %190 = vmatpush1.bf16.msra.mxu0 0
      %191 = vmatprep.subr.bf16.mxu0 0
      %192 = vmatpush1.bf16.msra.mxu0 0
      %193 = vmatprep.subr.bf16.mxu0 0
      %194 = vmatpush1.bf16.msra.mxu0 0
      %195 = vmatprep.subr.bf16.mxu0 0
      %196 = vmatpush1.bf16.msra.mxu0 0
      %197 = vmatprep.subr.bf16.mxu0 0
      %198 = vmatpush1.bf16.msra.mxu0 0
      %199 = vmatprep.subr.bf16.mxu0 0
      %200 = vmatpush1.bf16.msra.mxu0 0
      %201 = vmatprep.subr.bf16.mxu0 0
      %202 = vmatpush1.bf16.msra.mxu0 0
      %203 = vmatprep.subr.bf16.mxu0 0
      %204 = vmatpush1.bf16.msra.mxu0 0
      %205 = vmatprep.subr.bf16.mxu0 0
      %206 = vmatpush1.bf16.msra.mxu0 0
      %207 = vmatprep.subr.bf16.mxu0 0
      %208 = vmatpush1.bf16.msra.mxu0 0
      %209 = vmatprep.subr.bf16.mxu0 0
      %210 = vmatpush1.bf16.msra.mxu0 0
      %211 = vmatprep.subr.bf16.mxu0 0
      %212 = vmatpush1.bf16.msra.mxu0 0
      %213 = vmatprep.mubr.bf16.mxu0 0
      %214 = vmatmul.mubr.bf16.gmra.mrb[0].mxu0 %v179
      %v215 = vpop.f32.mrb[0].mxu0
      %v216 = vadd.f32 0.0, %v215
      %v217 = vpop.f32.mrb[0].mxu0
      %v218 = vpop.f32.mrb[0].mxu0
      %v219 = vadd.f32 0.0, %v218
      %v220 = vpop.f32.mrb[0].mxu0
      %221 = vdwg.mxu0
      %v222 = vmax.f32 %v216, 0.0
      %v223 = vmax.f32 %v219, 0.0
      %224 = vst.msk [vmem:[#allocation3] sm:$0xff] %vm90, %v222
      %225 = vst.msk [vmem:[#allocation3 + $0x8] sm:$0xff] %vm90, %v223
    $region25: #{allset_forward_pallas.15} parent=1 // pred_fallthru
      _
    // Predicated region
    $region26: #{allset_forward_pallas.15} parent=1 // pred_check
      _
    $region27: #{allset_forward_pallas.15} parent=1 // pred_check_branch
      %227 = sbr.rel (0) target = $region29
    $region28: #{allset_forward_pallas.15} parent=1 // pred_region
      %s229 = ssub.s32 256, 256
      %230 = vsyncadd [#allocation4], %s229
      %s231 = sshll.u32 [#allocation3], 4
      %s232 = int_to_ptr.vmem [resolvable:$true] %s231
      %237 = dma.vmem_to_hbm [thread:$0]  %s232, 256, %s4, [#allocation4], 128, 128, 8
    $region29: #{allset_forward_pallas.15} parent=1 // pred_fallthru
      _
    // Predicated region
    $region30: #{allset_forward_pallas.15} parent=1 // pred_check
      _
    $region31: #{allset_forward_pallas.15} parent=1 // pred_check_branch
      %239 = sbr.rel (0) target = $region33
    $region32: #{allset_forward_pallas.15} parent=1 // pred_region
      %240 = dma.done [#allocation4], 256
    $region33: #{allset_forward_pallas.15} parent=1 // pred_fallthru
      _
    %241 = vsyncpa [#allocation4], 1

</llo_original>
